<compile_context>
chip_gen: v5e
topology: v5e:2x2
jax: 0.10.0
libtpu: 0.0.40
codegen_flags: <defaults>
</compile_context>

<pallas_src>
import functools
import math

import jax
import jax.numpy as jnp
import numpy as np
from jax.experimental import pallas as pl
from jax.experimental.pallas import tpu as pltpu

# ------------------------- config (consistent with the module) ---------------
OBS_VOCAB = 16
ACT_VOCAB = 4
VOCAB_TOTAL = OBS_VOCAB + ACT_VOCAB          # merged embedding table rows
TOKENS_PER_BLOCK = 4
MAX_BLOCKS = 2
MAX_TOKENS = TOKENS_PER_BLOCK * MAX_BLOCKS
EMBED_DIM = 32
NUM_HEADS = 2
NUM_LAYERS = 2
BATCH = 2
NUM_STEPS = MAX_TOKENS                       # full sequence, prev_steps = 0
NUM_REW = 3
NUM_END = 2
LOGITS_PAD = 128                             # lane-dense output slab width
X_LANE0 = 64                                 # output_sequence lives in lanes [64:96]

# ---- packed-slab row layout (all offsets static, sublane-tile aligned) -------
E = EMBED_DIM
EMB_K = 48                                   # vocab(20) + pos(8) padded to 48 rows
LAYER_W_ROW0 = 48
LAYER_W_ROWS = 7 * E                         # Wqkv(E) + Wproj(E) + Wfc1(E) + Wfc2(4E)
HEAD_W1_ROW0 = LAYER_W_ROW0 + NUM_LAYERS * LAYER_W_ROWS      # 496
HEAD_W2_ROW0 = HEAD_W1_ROW0 + E                              # 528
WSLAB_ROWS = HEAD_W2_ROW0 + 128                              # 656

FSLAB_ROWS = 56
MASK_ROW0 = 24                               # (2N, 2N) additive bias lives at rows 24:56


# ------------------------------- kernel --------------------------------------
def world_model_kernel(tok_ref, w_ref, f_ref, out_ref, *,
                       batch, seq_len, num_layers, num_heads, embed_dim):
    B, T, H = batch, seq_len, num_heads
    Ed = embed_dim
    N = B * T
    Dh = Ed // H
    N2 = 2 * N
    inv_sqrt_dh = 1.0 / math.sqrt(Dh)
    inv_sqrt2 = 1.0 / math.sqrt(2.0)
    inv_e = 1.0 / Ed
    f32 = jnp.float32
    bf16 = jnp.bfloat16

    def ln(v, frow):
        # one-pass LayerNorm: sum(x) and sum(x*x) are independent reductions
        w = f_ref[frow:frow + 1, 0:Ed]
        b = f_ref[frow + 1:frow + 2, 0:Ed]
        s1 = jnp.sum(v, axis=-1, keepdims=True)
        s2 = jnp.sum(v * v, axis=-1, keepdims=True)
        mu = s1 * inv_e
        var = s2 * inv_e - mu * mu
        return (v - mu) * jax.lax.rsqrt(var + 1e-5) * w + b

    # ---------------- embedding: two-hot (token row + pos row) MXU gather ----
    tok = tok_ref[...]                                            # (N, 1) int32
    col = jax.lax.broadcasted_iota(jnp.int32, (N, EMB_K), 1)
    row = jax.lax.broadcasted_iota(jnp.int32, (N, 1), 0)
    pos_col = VOCAB_TOTAL + row % T
    twohot = jnp.logical_or(col == tok, col == pos_col).astype(bf16)
    x = jnp.dot(twohot, w_ref[0:EMB_K, 0:Ed],
                preferred_element_type=f32)                       # (N, E) = emb + pos

    # ---------------- hoisted constants ---------------------------------------
    mask2 = f_ref[MASK_ROW0:MASK_ROW0 + N2, 0:N2]                 # (2N, 2N) additive bias
    lane_e = jax.lax.broadcasted_iota(jnp.int32, (N, Ed), 1)
    lane_o = jax.lax.broadcasted_iota(jnp.int32, (N, LOGITS_PAD), 1)

    # ---------------- transformer blocks --------------------------------------
    for l in range(num_layers):
        wb = LAYER_W_ROW0 + l * LAYER_W_ROWS
        fb = l * 8

        # --- self-attention, both heads packed along the sublane axis ---
        xn = ln(x, fb + 0)
        qkv = jnp.dot(xn.astype(bf16), w_ref[wb:wb + Ed, 0:3 * Ed],
                      preferred_element_type=f32) + f_ref[fb + 4:fb + 5, 0:3 * Ed]
        q_s = jnp.concatenate([qkv[:, 0:Dh], qkv[:, Dh:Ed]], axis=0)              # (2N, Dh)
        k_s = jnp.concatenate([qkv[:, Ed:Ed + Dh], qkv[:, Ed + Dh:2 * Ed]], axis=0)
        v = qkv[:, 2 * Ed:3 * Ed]
        v_s = jnp.concatenate([jnp.where(lane_e < Dh, v, 0.0),
                               jnp.where(lane_e >= Dh, v, 0.0)], axis=0)          # (2N, E)

        att = jax.lax.dot_general(q_s.astype(bf16), k_s.astype(bf16),
                                  (((1,), (1,)), ((), ())),
                                  preferred_element_type=f32)                      # (2N, 2N)
        att = att * inv_sqrt_dh + mask2
        att = att - jnp.max(att, axis=-1, keepdims=True)
        p = jnp.exp(att)
        p = p * pl.reciprocal(jnp.sum(p, axis=-1, keepdims=True), approx=True)
        y_w = jnp.dot(p.astype(bf16), v_s.astype(bf16),
                      preferred_element_type=f32)                                  # (2N, E)
        y = y_w[0:N, :] + y_w[N:N2, :]                                             # head concat
        x = x + jnp.dot(y.astype(bf16), w_ref[wb + Ed:wb + 2 * Ed, 0:Ed],
                        preferred_element_type=f32) + f_ref[fb + 5:fb + 6, 0:Ed]

        # --- MLP (exact GELU, matching nn.GELU default) ---
        xn2 = ln(x, fb + 2)
        h = jnp.dot(xn2.astype(bf16), w_ref[wb + 2 * Ed:wb + 3 * Ed, 0:4 * Ed],
                    preferred_element_type=f32) + f_ref[fb + 6:fb + 7, 0:4 * Ed]
        h = 0.5 * h * (1.0 + jax.lax.erf(h * inv_sqrt2))
        h = jnp.dot(h.astype(bf16), w_ref[wb + 3 * Ed:wb + 7 * Ed, 0:Ed],
                    preferred_element_type=f32) + f_ref[fb + 7:fb + 8, 0:Ed]
        x = x + h

    # ---------------- final LN + fused heads + x pass-through -----------------
    # head_w1_wide lanes [96:128] = identity (x pass-through, ReLU skipped there);
    # head_w2_wide rows  [96:128] route it into output lanes [64:96].
    x = ln(x, 16)
    h1 = jnp.dot(x.astype(bf16), w_ref[HEAD_W1_ROW0:HEAD_W1_ROW0 + Ed, :],
                 preferred_element_type=f32) + f_ref[18:19, :]
    h1 = jnp.where(lane_o < 3 * Ed, jnp.maximum(h1, 0.0), h1)
    out = jnp.dot(h1.astype(bf16), w_ref[HEAD_W2_ROW0:HEAD_W2_ROW0 + 128, :],
                  preferred_element_type=f32) + f_ref[19:20, :]
    out_ref[...] = out                                            # one unmasked 128-lane store


# ------------------------------ packing ---------------------------------------
def _build_mask_bias():
    """(2N, 2N) additive bias: 0 where (same head, same batch, causal), -1e30 else."""
    N = BATCH * NUM_STEPS
    T = NUM_STEPS
    idx = np.arange(2 * N)
    r, c = idx[:, None], idx[None, :]
    rr, cc = r % N, c % N
    valid = ((r // N) == (c // N)) & ((rr // T) == (cc // T)) & (cc <= rr)
    return np.where(valid, 0.0, -1e30).astype(np.float32)


def pack_params(p):
    """Pack all weights into one bf16 matmul slab + one f32 param/bias/mask slab."""
    L, Ed = NUM_LAYERS, EMBED_DIM
    T = NUM_STEPS

    wslab = np.zeros((WSLAB_ROWS, 128), np.float32)
    fslab = np.zeros((FSLAB_ROWS, 128), np.float32)

    # merged embedding table: [obs | act | pos] rows
    wslab[0:OBS_VOCAB, 0:Ed] = np.asarray(p['obs_table'])
    wslab[OBS_VOCAB:VOCAB_TOTAL, 0:Ed] = np.asarray(p['act_table'])
    wslab[VOCAB_TOTAL:VOCAB_TOTAL + T, 0:Ed] = np.asarray(p['pos_emb'])[0:T]

    for l in range(L):
        wb = LAYER_W_ROW0 + l * LAYER_W_ROWS
        wqkv = np.concatenate([np.asarray(p['wq'][l]), np.asarray(p['wk'][l]),
                               np.asarray(p['wv'][l])], axis=1)                  # (E, 3E)
        wslab[wb:wb + Ed, 0:3 * Ed] = wqkv
        wslab[wb + Ed:wb + 2 * Ed, 0:Ed] = np.asarray(p['wproj'][l])
        wslab[wb + 2 * Ed:wb + 3 * Ed, 0:4 * Ed] = np.asarray(p['wfc1'][l])
        wslab[wb + 3 * Ed:wb + 7 * Ed, 0:Ed] = np.asarray(p['wfc2'][l])

        fb = l * 8
        fslab[fb + 0, 0:Ed] = np.asarray(p['ln1_w'][l])
        fslab[fb + 1, 0:Ed] = np.asarray(p['ln1_b'][l])
        fslab[fb + 2, 0:Ed] = np.asarray(p['ln2_w'][l])
        fslab[fb + 3, 0:Ed] = np.asarray(p['ln2_b'][l])
        fslab[fb + 4, 0:3 * Ed] = np.concatenate([np.asarray(p['bq'][l]),
                                                  np.asarray(p['bk'][l]),
                                                  np.asarray(p['bv'][l])])
        fslab[fb + 5, 0:Ed] = np.asarray(p['bproj'][l])
        fslab[fb + 6, 0:4 * Ed] = np.asarray(p['bfc1'][l])
        fslab[fb + 7, 0:Ed] = np.asarray(p['bfc2'][l])

    # fused heads: [obs | rew | end | identity(x pass-through)]
    w1 = np.zeros((Ed, 128), np.float32)
    w1[:, 0:Ed] = np.asarray(p['head_obs_w1'])
    w1[:, Ed:2 * Ed] = np.asarray(p['head_rew_w1'])
    w1[:, 2 * Ed:3 * Ed] = np.asarray(p['head_end_w1'])
    w1[:, 3 * Ed:4 * Ed] = np.eye(Ed, dtype=np.float32)
    wslab[HEAD_W1_ROW0:HEAD_W1_ROW0 + Ed, :] = w1

    w2 = np.zeros((128, 128), np.float32)
    w2[0:Ed, 0:OBS_VOCAB] = np.asarray(p['head_obs_w2'])
    w2[Ed:2 * Ed, OBS_VOCAB:OBS_VOCAB + NUM_REW] = np.asarray(p['head_rew_w2'])
    w2[2 * Ed:3 * Ed, OBS_VOCAB + NUM_REW:OBS_VOCAB + NUM_REW + NUM_END] = \
        np.asarray(p['head_end_w2'])
    w2[3 * Ed:4 * Ed, X_LANE0:X_LANE0 + Ed] = np.eye(Ed, dtype=np.float32)
    wslab[HEAD_W2_ROW0:HEAD_W2_ROW0 + 128, :] = w2

    fslab[16, 0:Ed] = np.asarray(p['lnf_w'][0])
    fslab[17, 0:Ed] = np.asarray(p['lnf_b'][0])
    fslab[18, 0:Ed] = np.asarray(p['head_obs_b1'][0])
    fslab[18, Ed:2 * Ed] = np.asarray(p['head_rew_b1'][0])
    fslab[18, 2 * Ed:3 * Ed] = np.asarray(p['head_end_b1'][0])
    fslab[19, 0:OBS_VOCAB] = np.asarray(p['head_obs_b2'][0])
    fslab[19, OBS_VOCAB:OBS_VOCAB + NUM_REW] = np.asarray(p['head_rew_b2'][0])
    fslab[19, OBS_VOCAB + NUM_REW:OBS_VOCAB + NUM_REW + NUM_END] = \
        np.asarray(p['head_end_b2'][0])

    fslab[MASK_ROW0:MASK_ROW0 + 2 * BATCH * NUM_STEPS, 0:2 * BATCH * NUM_STEPS] = \
        _build_mask_bias()

    return {'wslab': jnp.asarray(wslab, dtype=jnp.bfloat16),
            'fslab': jnp.asarray(fslab, dtype=jnp.float32)}


# ------------------------------ wrapper ----------------------------------------
def world_model_forward(tokens, packed):
    """tokens: (B, T) int32; returns dict matching WorldModelOutput fields."""
    B, T = tokens.shape
    N = B * T
    K = TOKENS_PER_BLOCK

    # act tokens index into the merged table at offset OBS_VOCAB
    is_act = ((jnp.arange(T) % K) == K - 1)[None, :]
    tok_adj = (tokens + jnp.where(is_act, OBS_VOCAB, 0)).reshape(N, 1).astype(jnp.int32)

    kernel = functools.partial(world_model_kernel, batch=B, seq_len=T,
                               num_layers=NUM_LAYERS, num_heads=NUM_HEADS,
                               embed_dim=EMBED_DIM)
    vmem = pl.BlockSpec(memory_space=pltpu.MemorySpace.VMEM)

    out = pl.pallas_call(
        kernel,
        out_shape=jax.ShapeDtypeStruct((N, LOGITS_PAD), jnp.float32),
        in_specs=[vmem, vmem, vmem],
        out_specs=vmem,
    )(tok_adj, packed['wslab'], packed['fslab'])

    out = out.reshape(B, T, LOGITS_PAD)

    # Head position patterns (static, prev_steps = 0)
    all_pos = np.arange(T)
    obs_idx = all_pos[all_pos % K != K - 2]       # all_but_last_obs_tokens_pattern
    act_idx = all_pos[all_pos % K == K - 1]       # act_tokens_pattern

    x = out[:, :, X_LANE0:X_LANE0 + EMBED_DIM]
    logits_obs = out[:, obs_idx, 0:OBS_VOCAB]
    logits_rew = out[:, act_idx, OBS_VOCAB:OBS_VOCAB + NUM_REW]
    logits_end = out[:, act_idx, OBS_VOCAB + NUM_REW:OBS_VOCAB + NUM_REW + NUM_END]

    # TODO(synk): past_keys_values (incremental decode KV-cache) path not implemented;
    # only the past_keys_values=None training-style forward is covered.
    return dict(output_sequence=x,
                logits_observations=logits_obs,
                logits_rewards=logits_rew,
                logits_ends=logits_end)


# ------------------------------ init ------------------------------------------
def init_params(key):
    L, Ed = NUM_LAYERS, EMBED_DIM

    def normal(k, shape):
        return 0.02 * jax.random.normal(k, shape, dtype=jnp.float32)

    it = iter(jax.random.split(key, 32))
    p = {}
    p['pos_emb'] = normal(next(it), (MAX_TOKENS, Ed))
    p['act_table'] = normal(next(it), (ACT_VOCAB, Ed))
    p['obs_table'] = normal(next(it), (OBS_VOCAB, Ed))

    p['ln1_w'] = jnp.ones((L, Ed), jnp.float32); p['ln1_b'] = jnp.zeros((L, Ed), jnp.float32)
    p['ln2_w'] = jnp.ones((L, Ed), jnp.float32); p['ln2_b'] = jnp.zeros((L, Ed), jnp.float32)
    p['lnf_w'] = jnp.ones((1, Ed), jnp.float32); p['lnf_b'] = jnp.zeros((1, Ed), jnp.float32)

    p['wq'] = normal(next(it), (L, Ed, Ed)); p['bq'] = jnp.zeros((L, Ed), jnp.float32)
    p['wk'] = normal(next(it), (L, Ed, Ed)); p['bk'] = jnp.zeros((L, Ed), jnp.float32)
    p['wv'] = normal(next(it), (L, Ed, Ed)); p['bv'] = jnp.zeros((L, Ed), jnp.float32)
    p['wproj'] = normal(next(it), (L, Ed, Ed)); p['bproj'] = jnp.zeros((L, Ed), jnp.float32)
    p['wfc1'] = normal(next(it), (L, Ed, 4 * Ed)); p['bfc1'] = jnp.zeros((L, 4 * Ed), jnp.float32)
    p['wfc2'] = normal(next(it), (L, 4 * Ed, Ed)); p['bfc2'] = jnp.zeros((L, Ed), jnp.float32)

    for name, out_dim in (('obs', OBS_VOCAB), ('rew', NUM_REW), ('end', NUM_END)):
        p[f'head_{name}_w1'] = normal(next(it), (Ed, Ed))
        p[f'head_{name}_b1'] = jnp.zeros((1, Ed), jnp.float32)
        p[f'head_{name}_w2'] = normal(next(it), (Ed, out_dim))
        p[f'head_{name}_b2'] = jnp.zeros((1, out_dim), jnp.float32)
    return p


# ------------------------------ main -------------------------------------------
if __name__ == "__main__":
    key = jax.random.PRNGKey(0)
    kp, kt_obs, kt_act = jax.random.split(key, 3)
    params = init_params(kp)
    packed = pack_params(params)

    # tokens: obs tokens everywhere except the last position of each block (act token)
    obs_tok = jax.random.randint(kt_obs, (BATCH, NUM_STEPS), 0, OBS_VOCAB)
    act_tok = jax.random.randint(kt_act, (BATCH, NUM_STEPS), 0, ACT_VOCAB)
    pos_in_block = jnp.arange(NUM_STEPS) % TOKENS_PER_BLOCK
    is_act = (pos_in_block == TOKENS_PER_BLOCK - 1)
    tokens = jnp.where(is_act[None, :], act_tok, obs_tok).astype(jnp.int32)

    fwd = jax.jit(world_model_forward)
    out = jax.block_until_ready(fwd(tokens, packed))

    # shape sanity (WorldModelOutput fields)
    assert out['output_sequence'].shape == (BATCH, NUM_STEPS, EMBED_DIM)
    assert out['logits_observations'].shape == (BATCH, 6, OBS_VOCAB)
    assert out['logits_rewards'].shape == (BATCH, MAX_BLOCKS, NUM_REW)
    assert out['logits_ends'].shape == (BATCH, MAX_BLOCKS, NUM_END)
    assert bool(jnp.all(jnp.isfinite(out['logits_observations'])))

    print("KERNEL_OK")
</pallas_src>

<mosaic_0001>
module attributes {stable_mosaic.version = 11 : i64} {
  func.func @world_model_kernel(%arg0: memref<16x1xi32, #tpu.memory_space<vmem>>, %arg1: memref<656x128xbf16, #tpu.memory_space<vmem>>, %arg2: memref<56x128xf32, #tpu.memory_space<vmem>>, %arg3: memref<16x128xf32, #tpu.memory_space<vmem>>) attributes {dimension_semantics = [], scalar_prefetch = 0 : i64, scratch_operands = 0 : i64, tpu.core_type = #tpu.core_type<tc>} {
    %c0 = arith.constant 0 : index
    %c0_0 = arith.constant 0 : index
    %0 = vector.load %arg0[%c0, %c0_0] : memref<16x1xi32, #tpu.memory_space<vmem>>, vector<16x1xi32>
    %1 = tpu.iota {dimensions = array<i32: 1>} : vector<16x48xi32>
    %2 = tpu.iota {dimensions = array<i32: 0>} : vector<16x1xi32>
    %c8_i32 = arith.constant 8 : i32
    %c0_i32 = arith.constant 0 : i32
    %3 = arith.cmpi eq, %c8_i32, %c0_i32 : i32
    %c1_i32 = arith.constant 1 : i32
    %4 = arith.select %3, %c1_i32, %c8_i32 : i32
    %5 = vector.broadcast %4 : i32 to vector<16x1xi32>
    %6 = arith.remsi %2, %5 : vector<16x1xi32>
    %c0_i32_1 = arith.constant 0 : i32
    %7 = vector.broadcast %c0_i32_1 : i32 to vector<16x1xi32>
    %8 = arith.cmpi ne, %6, %7 : vector<16x1xi32>
    %c0_i32_2 = arith.constant 0 : i32
    %9 = vector.broadcast %c0_i32_2 : i32 to vector<16x1xi32>
    %10 = arith.cmpi slt, %6, %9 : vector<16x1xi32>
    %c0_i32_3 = arith.constant 0 : i32
    %11 = arith.cmpi slt, %4, %c0_i32_3 : i32
    %12 = vector.broadcast %11 : i1 to vector<16x1xi1>
    %13 = vector.broadcast %12 : vector<16x1xi1> to vector<16x1xi1>
    %14 = arith.xori %10, %13 : vector<16x1xi1>
    %15 = arith.andi %14, %8 : vector<16x1xi1>
    %16 = vector.broadcast %4 : i32 to vector<16x1xi32>
    %17 = arith.addi %6, %16 : vector<16x1xi32>
    %18 = arith.select %15, %17, %6 : vector<16x1xi1>, vector<16x1xi32>
    %c20_i32 = arith.constant 20 : i32
    %19 = vector.broadcast %c20_i32 : i32 to vector<16x1xi32>
    %20 = arith.addi %19, %18 : vector<16x1xi32>
    %21 = vector.broadcast %0 : vector<16x1xi32> to vector<16x48xi32>
    %22 = arith.cmpi eq, %1, %21 : vector<16x48xi32>
    %23 = vector.broadcast %20 : vector<16x1xi32> to vector<16x48xi32>
    %24 = arith.cmpi eq, %1, %23 : vector<16x48xi32>
    %25 = arith.ori %22, %24 : vector<16x48xi1>
    %26 = arith.extui %25 : vector<16x48xi1> to vector<16x48xi32>
    %27 = arith.sitofp %26 : vector<16x48xi32> to vector<16x48xf32>
    %28 = arith.truncf %27 : vector<16x48xf32> to vector<16x48xbf16>
    %c0_4 = arith.constant 0 : index
    %c0_5 = arith.constant 0 : index
    %29 = vector.load %arg1[%c0_4, %c0_5] : memref<656x128xbf16, #tpu.memory_space<vmem>>, vector<48x32xbf16>
    %cst = arith.constant dense<0.000000e+00> : vector<16x32xf32>
    %30 = tpu.matmul %28, %29, %cst {dimension_numbers = #tpu.dot_dimension_numbers<[1], [0], [0], [1], [0, 0, 1, 1], [], []>} : vector<16x48xbf16>, vector<48x32xbf16>, vector<16x32xf32> -> vector<16x32xf32>
    %c24 = arith.constant 24 : index
    %c0_6 = arith.constant 0 : index
    %31 = vector.load %arg2[%c24, %c0_6] : memref<56x128xf32, #tpu.memory_space<vmem>>, vector<32x32xf32>
    %32 = tpu.iota {dimensions = array<i32: 1>} : vector<16x32xi32>
    %33 = tpu.iota {dimensions = array<i32: 1>} : vector<16x128xi32>
    %c0_7 = arith.constant 0 : index
    %c0_8 = arith.constant 0 : index
    %34 = vector.load %arg2[%c0_7, %c0_8] : memref<56x128xf32, #tpu.memory_space<vmem>>, vector<1x32xf32>
    %c1 = arith.constant 1 : index
    %c0_9 = arith.constant 0 : index
    %35 = vector.load %arg2[%c1, %c0_9] : memref<56x128xf32, #tpu.memory_space<vmem>>, vector<1x32xf32>
    %cst_10 = arith.constant dense<0.000000e+00> : vector<16xf32>
    %36 = vector.multi_reduction <add>, %30, %cst_10 [1] : vector<16x32xf32> to vector<16xf32>
    %37 = vector.shape_cast %36 : vector<16xf32> to vector<16x1xf32>
    %38 = arith.mulf %30, %30 : vector<16x32xf32>
    %cst_11 = arith.constant dense<0.000000e+00> : vector<16xf32>
    %39 = vector.multi_reduction <add>, %38, %cst_11 [1] : vector<16x32xf32> to vector<16xf32>
    %40 = vector.shape_cast %39 : vector<16xf32> to vector<16x1xf32>
    %cst_12 = arith.constant 3.125000e-02 : f32
    %41 = vector.broadcast %cst_12 : f32 to vector<16x1xf32>
    %42 = arith.mulf %37, %41 : vector<16x1xf32>
    %cst_13 = arith.constant 3.125000e-02 : f32
    %43 = vector.broadcast %cst_13 : f32 to vector<16x1xf32>
    %44 = arith.mulf %40, %43 : vector<16x1xf32>
    %45 = arith.mulf %42, %42 : vector<16x1xf32>
    %46 = arith.subf %44, %45 : vector<16x1xf32>
    %47 = vector.broadcast %42 : vector<16x1xf32> to vector<16x32xf32>
    %48 = arith.subf %30, %47 : vector<16x32xf32>
    %cst_14 = arith.constant 9.99999974E-6 : f32
    %49 = vector.broadcast %cst_14 : f32 to vector<16x1xf32>
    %50 = arith.addf %46, %49 : vector<16x1xf32>
    %51 = math.rsqrt %50 : vector<16x1xf32>
    %52 = vector.broadcast %51 : vector<16x1xf32> to vector<16x32xf32>
    %53 = arith.mulf %48, %52 : vector<16x32xf32>
    %54 = vector.broadcast %34 : vector<1x32xf32> to vector<16x32xf32>
    %55 = arith.mulf %53, %54 : vector<16x32xf32>
    %56 = vector.broadcast %35 : vector<1x32xf32> to vector<16x32xf32>
    %57 = arith.addf %55, %56 : vector<16x32xf32>
    %58 = arith.truncf %57 : vector<16x32xf32> to vector<16x32xbf16>
    %c48 = arith.constant 48 : index
    %c0_15 = arith.constant 0 : index
    %59 = vector.load %arg1[%c48, %c0_15] : memref<656x128xbf16, #tpu.memory_space<vmem>>, vector<32x96xbf16>
    %cst_16 = arith.constant dense<0.000000e+00> : vector<16x96xf32>
    %60 = tpu.matmul %58, %59, %cst_16 {dimension_numbers = #tpu.dot_dimension_numbers<[1], [0], [0], [1], [0, 0, 1, 1], [], []>} : vector<16x32xbf16>, vector<32x96xbf16>, vector<16x96xf32> -> vector<16x96xf32>
    %c4 = arith.constant 4 : index
    %c0_17 = arith.constant 0 : index
    %61 = vector.load %arg2[%c4, %c0_17] : memref<56x128xf32, #tpu.memory_space<vmem>>, vector<1x96xf32>
    %62 = vector.broadcast %61 : vector<1x96xf32> to vector<16x96xf32>
    %63 = arith.addf %60, %62 : vector<16x96xf32>
    %64 = vector.extract_strided_slice %63 {offsets = [0, 0], sizes = [16, 16], strides = [1, 1]} : vector<16x96xf32> to vector<16x16xf32>
    %65 = vector.extract_strided_slice %63 {offsets = [0, 16], sizes = [16, 16], strides = [1, 1]} : vector<16x96xf32> to vector<16x16xf32>
    %66 = tpu.concatenate %64, %65 in 0 : vector<16x16xf32>, vector<16x16xf32> -> vector<32x16xf32>
    %67 = vector.extract_strided_slice %63 {offsets = [0, 32], sizes = [16, 16], strides = [1, 1]} : vector<16x96xf32> to vector<16x16xf32>
    %68 = vector.extract_strided_slice %63 {offsets = [0, 48], sizes = [16, 16], strides = [1, 1]} : vector<16x96xf32> to vector<16x16xf32>
    %69 = tpu.concatenate %67, %68 in 0 : vector<16x16xf32>, vector<16x16xf32> -> vector<32x16xf32>
    %70 = vector.extract_strided_slice %63 {offsets = [0, 64], sizes = [16, 32], strides = [1, 1]} : vector<16x96xf32> to vector<16x32xf32>
    %c16_i32 = arith.constant 16 : i32
    %71 = vector.broadcast %c16_i32 : i32 to vector<16x32xi32>
    %72 = arith.cmpi slt, %32, %71 : vector<16x32xi32>
    %cst_18 = arith.constant 0.000000e+00 : f32
    %73 = vector.broadcast %cst_18 : f32 to vector<16x32xf32>
    %74 = arith.select %72, %70, %73 : vector<16x32xi1>, vector<16x32xf32>
    %c16_i32_19 = arith.constant 16 : i32
    %75 = vector.broadcast %c16_i32_19 : i32 to vector<16x32xi32>
    %76 = arith.cmpi sge, %32, %75 : vector<16x32xi32>
    %cst_20 = arith.constant 0.000000e+00 : f32
    %77 = vector.broadcast %cst_20 : f32 to vector<16x32xf32>
    %78 = arith.select %76, %70, %77 : vector<16x32xi1>, vector<16x32xf32>
    %79 = tpu.concatenate %74, %78 in 0 : vector<16x32xf32>, vector<16x32xf32> -> vector<32x32xf32>
    %80 = arith.truncf %66 : vector<32x16xf32> to vector<32x16xbf16>
    %81 = arith.truncf %69 : vector<32x16xf32> to vector<32x16xbf16>
    %cst_21 = arith.constant dense<0.000000e+00> : vector<32x32xf32>
    %82 = tpu.matmul %80, %81, %cst_21 {dimension_numbers = #tpu.dot_dimension_numbers<[1], [1], [0], [0], [0, 0, 1, 0], [], []>} : vector<32x16xbf16>, vector<32x16xbf16>, vector<32x32xf32> -> vector<32x32xf32>
    %cst_22 = arith.constant 2.500000e-01 : f32
    %83 = vector.broadcast %cst_22 : f32 to vector<32x32xf32>
    %84 = arith.mulf %82, %83 : vector<32x32xf32>
    %85 = arith.addf %84, %31 : vector<32x32xf32>
    %cst_23 = arith.constant dense<0xFF800000> : vector<32xf32>
    %86 = vector.multi_reduction <maximumf>, %85, %cst_23 [1] : vector<32x32xf32> to vector<32xf32>
    %87 = vector.shape_cast %86 : vector<32xf32> to vector<32x1xf32>
    %88 = vector.broadcast %87 : vector<32x1xf32> to vector<32x32xf32>
    %89 = arith.subf %85, %88 : vector<32x32xf32>
    %90 = math.exp %89 : vector<32x32xf32>
    %cst_24 = arith.constant dense<0.000000e+00> : vector<32xf32>
    %91 = vector.multi_reduction <add>, %90, %cst_24 [1] : vector<32x32xf32> to vector<32xf32>
    %92 = vector.shape_cast %91 : vector<32xf32> to vector<32x1xf32>
    %93 = tpu.reciprocal %92 {approx = true} : vector<32x1xf32> -> vector<32x1xf32>
    %94 = vector.broadcast %93 : vector<32x1xf32> to vector<32x32xf32>
    %95 = arith.mulf %90, %94 : vector<32x32xf32>
    %96 = arith.truncf %95 : vector<32x32xf32> to vector<32x32xbf16>
    %97 = arith.truncf %79 : vector<32x32xf32> to vector<32x32xbf16>
    %cst_25 = arith.constant dense<0.000000e+00> : vector<32x32xf32>
    %98 = tpu.matmul %96, %97, %cst_25 {dimension_numbers = #tpu.dot_dimension_numbers<[1], [0], [0], [1], [0, 0, 1, 1], [], []>} : vector<32x32xbf16>, vector<32x32xbf16>, vector<32x32xf32> -> vector<32x32xf32>
    %99 = vector.extract_strided_slice %98 {offsets = [0, 0], sizes = [16, 32], strides = [1, 1]} : vector<32x32xf32> to vector<16x32xf32>
    %100 = vector.extract_strided_slice %98 {offsets = [16, 0], sizes = [16, 32], strides = [1, 1]} : vector<32x32xf32> to vector<16x32xf32>
    %101 = arith.addf %99, %100 : vector<16x32xf32>
    %102 = arith.truncf %101 : vector<16x32xf32> to vector<16x32xbf16>
    %c80 = arith.constant 80 : index
    %c0_26 = arith.constant 0 : index
    %103 = vector.load %arg1[%c80, %c0_26] : memref<656x128xbf16, #tpu.memory_space<vmem>>, vector<32x32xbf16>
    %cst_27 = arith.constant dense<0.000000e+00> : vector<16x32xf32>
    %104 = tpu.matmul %102, %103, %cst_27 {dimension_numbers = #tpu.dot_dimension_numbers<[1], [0], [0], [1], [0, 0, 1, 1], [], []>} : vector<16x32xbf16>, vector<32x32xbf16>, vector<16x32xf32> -> vector<16x32xf32>
    %105 = arith.addf %30, %104 : vector<16x32xf32>
    %c5 = arith.constant 5 : index
    %c0_28 = arith.constant 0 : index
    %106 = vector.load %arg2[%c5, %c0_28] : memref<56x128xf32, #tpu.memory_space<vmem>>, vector<1x32xf32>
    %107 = vector.broadcast %106 : vector<1x32xf32> to vector<16x32xf32>
    %108 = arith.addf %105, %107 : vector<16x32xf32>
    %c2 = arith.constant 2 : index
    %c0_29 = arith.constant 0 : index
    %109 = vector.load %arg2[%c2, %c0_29] : memref<56x128xf32, #tpu.memory_space<vmem>>, vector<1x32xf32>
    %c3 = arith.constant 3 : index
    %c0_30 = arith.constant 0 : index
    %110 = vector.load %arg2[%c3, %c0_30] : memref<56x128xf32, #tpu.memory_space<vmem>>, vector<1x32xf32>
    %cst_31 = arith.constant dense<0.000000e+00> : vector<16xf32>
    %111 = vector.multi_reduction <add>, %108, %cst_31 [1] : vector<16x32xf32> to vector<16xf32>
    %112 = vector.shape_cast %111 : vector<16xf32> to vector<16x1xf32>
    %113 = arith.mulf %108, %108 : vector<16x32xf32>
    %cst_32 = arith.constant dense<0.000000e+00> : vector<16xf32>
    %114 = vector.multi_reduction <add>, %113, %cst_32 [1] : vector<16x32xf32> to vector<16xf32>
    %115 = vector.shape_cast %114 : vector<16xf32> to vector<16x1xf32>
    %cst_33 = arith.constant 3.125000e-02 : f32
    %116 = vector.broadcast %cst_33 : f32 to vector<16x1xf32>
    %117 = arith.mulf %112, %116 : vector<16x1xf32>
    %cst_34 = arith.constant 3.125000e-02 : f32
    %118 = vector.broadcast %cst_34 : f32 to vector<16x1xf32>
    %119 = arith.mulf %115, %118 : vector<16x1xf32>
    %120 = arith.mulf %117, %117 : vector<16x1xf32>
    %121 = arith.subf %119, %120 : vector<16x1xf32>
    %122 = vector.broadcast %117 : vector<16x1xf32> to vector<16x32xf32>
    %123 = arith.subf %108, %122 : vector<16x32xf32>
    %cst_35 = arith.constant 9.99999974E-6 : f32
    %124 = vector.broadcast %cst_35 : f32 to vector<16x1xf32>
    %125 = arith.addf %121, %124 : vector<16x1xf32>
    %126 = math.rsqrt %125 : vector<16x1xf32>
    %127 = vector.broadcast %126 : vector<16x1xf32> to vector<16x32xf32>
    %128 = arith.mulf %123, %127 : vector<16x32xf32>
    %129 = vector.broadcast %109 : vector<1x32xf32> to vector<16x32xf32>
    %130 = arith.mulf %128, %129 : vector<16x32xf32>
    %131 = vector.broadcast %110 : vector<1x32xf32> to vector<16x32xf32>
    %132 = arith.addf %130, %131 : vector<16x32xf32>
    %133 = arith.truncf %132 : vector<16x32xf32> to vector<16x32xbf16>
    %c112 = arith.constant 112 : index
    %c0_36 = arith.constant 0 : index
    %134 = vector.load %arg1[%c112, %c0_36] : memref<656x128xbf16, #tpu.memory_space<vmem>>, vector<32x128xbf16>
    %cst_37 = arith.constant dense<0.000000e+00> : vector<16x128xf32>
    %135 = tpu.matmul %133, %134, %cst_37 {dimension_numbers = #tpu.dot_dimension_numbers<[1], [0], [0], [1], [0, 0, 1, 1], [], []>} : vector<16x32xbf16>, vector<32x128xbf16>, vector<16x128xf32> -> vector<16x128xf32>
    %c6 = arith.constant 6 : index
    %c0_38 = arith.constant 0 : index
    %136 = vector.load %arg2[%c6, %c0_38] : memref<56x128xf32, #tpu.memory_space<vmem>>, vector<1x128xf32>
    %137 = vector.broadcast %136 : vector<1x128xf32> to vector<16x128xf32>
    %138 = arith.addf %135, %137 : vector<16x128xf32>
    %cst_39 = arith.constant 5.000000e-01 : f32
    %139 = vector.broadcast %cst_39 : f32 to vector<16x128xf32>
    %140 = arith.mulf %139, %138 : vector<16x128xf32>
    %cst_40 = arith.constant 0.707106769 : f32
    %141 = vector.broadcast %cst_40 : f32 to vector<16x128xf32>
    %142 = arith.mulf %138, %141 : vector<16x128xf32>
    %143 = math.erf %142 : vector<16x128xf32>
    %cst_41 = arith.constant 1.000000e+00 : f32
    %144 = vector.broadcast %cst_41 : f32 to vector<16x128xf32>
    %145 = arith.addf %144, %143 : vector<16x128xf32>
    %146 = arith.mulf %140, %145 : vector<16x128xf32>
    %147 = arith.truncf %146 : vector<16x128xf32> to vector<16x128xbf16>
    %c144 = arith.constant 144 : index
    %c0_42 = arith.constant 0 : index
    %148 = vector.load %arg1[%c144, %c0_42] : memref<656x128xbf16, #tpu.memory_space<vmem>>, vector<128x32xbf16>
    %cst_43 = arith.constant dense<0.000000e+00> : vector<16x32xf32>
    %149 = tpu.matmul %147, %148, %cst_43 {dimension_numbers = #tpu.dot_dimension_numbers<[1], [0], [0], [1], [0, 0, 1, 1], [], []>} : vector<16x128xbf16>, vector<128x32xbf16>, vector<16x32xf32> -> vector<16x32xf32>
    %c7 = arith.constant 7 : index
    %c0_44 = arith.constant 0 : index
    %150 = vector.load %arg2[%c7, %c0_44] : memref<56x128xf32, #tpu.memory_space<vmem>>, vector<1x32xf32>
    %151 = vector.broadcast %150 : vector<1x32xf32> to vector<16x32xf32>
    %152 = arith.addf %149, %151 : vector<16x32xf32>
    %153 = arith.addf %108, %152 : vector<16x32xf32>
    %c8 = arith.constant 8 : index
    %c0_45 = arith.constant 0 : index
    %154 = vector.load %arg2[%c8, %c0_45] : memref<56x128xf32, #tpu.memory_space<vmem>>, vector<1x32xf32>
    %c9 = arith.constant 9 : index
    %c0_46 = arith.constant 0 : index
    %155 = vector.load %arg2[%c9, %c0_46] : memref<56x128xf32, #tpu.memory_space<vmem>>, vector<1x32xf32>
    %cst_47 = arith.constant dense<0.000000e+00> : vector<16xf32>
    %156 = vector.multi_reduction <add>, %153, %cst_47 [1] : vector<16x32xf32> to vector<16xf32>
    %157 = vector.shape_cast %156 : vector<16xf32> to vector<16x1xf32>
    %158 = arith.mulf %153, %153 : vector<16x32xf32>
    %cst_48 = arith.constant dense<0.000000e+00> : vector<16xf32>
    %159 = vector.multi_reduction <add>, %158, %cst_48 [1] : vector<16x32xf32> to vector<16xf32>
    %160 = vector.shape_cast %159 : vector<16xf32> to vector<16x1xf32>
    %cst_49 = arith.constant 3.125000e-02 : f32
    %161 = vector.broadcast %cst_49 : f32 to vector<16x1xf32>
    %162 = arith.mulf %157, %161 : vector<16x1xf32>
    %cst_50 = arith.constant 3.125000e-02 : f32
    %163 = vector.broadcast %cst_50 : f32 to vector<16x1xf32>
    %164 = arith.mulf %160, %163 : vector<16x1xf32>
    %165 = arith.mulf %162, %162 : vector<16x1xf32>
    %166 = arith.subf %164, %165 : vector<16x1xf32>
    %167 = vector.broadcast %162 : vector<16x1xf32> to vector<16x32xf32>
    %168 = arith.subf %153, %167 : vector<16x32xf32>
    %cst_51 = arith.constant 9.99999974E-6 : f32
    %169 = vector.broadcast %cst_51 : f32 to vector<16x1xf32>
    %170 = arith.addf %166, %169 : vector<16x1xf32>
    %171 = math.rsqrt %170 : vector<16x1xf32>
    %172 = vector.broadcast %171 : vector<16x1xf32> to vector<16x32xf32>
    %173 = arith.mulf %168, %172 : vector<16x32xf32>
    %174 = vector.broadcast %154 : vector<1x32xf32> to vector<16x32xf32>
    %175 = arith.mulf %173, %174 : vector<16x32xf32>
    %176 = vector.broadcast %155 : vector<1x32xf32> to vector<16x32xf32>
    %177 = arith.addf %175, %176 : vector<16x32xf32>
    %178 = arith.truncf %177 : vector<16x32xf32> to vector<16x32xbf16>
    %c272 = arith.constant 272 : index
    %c0_52 = arith.constant 0 : index
    %179 = vector.load %arg1[%c272, %c0_52] : memref<656x128xbf16, #tpu.memory_space<vmem>>, vector<32x96xbf16>
    %cst_53 = arith.constant dense<0.000000e+00> : vector<16x96xf32>
    %180 = tpu.matmul %178, %179, %cst_53 {dimension_numbers = #tpu.dot_dimension_numbers<[1], [0], [0], [1], [0, 0, 1, 1], [], []>} : vector<16x32xbf16>, vector<32x96xbf16>, vector<16x96xf32> -> vector<16x96xf32>
    %c12 = arith.constant 12 : index
    %c0_54 = arith.constant 0 : index
    %181 = vector.load %arg2[%c12, %c0_54] : memref<56x128xf32, #tpu.memory_space<vmem>>, vector<1x96xf32>
    %182 = vector.broadcast %181 : vector<1x96xf32> to vector<16x96xf32>
    %183 = arith.addf %180, %182 : vector<16x96xf32>
    %184 = vector.extract_strided_slice %183 {offsets = [0, 0], sizes = [16, 16], strides = [1, 1]} : vector<16x96xf32> to vector<16x16xf32>
    %185 = vector.extract_strided_slice %183 {offsets = [0, 16], sizes = [16, 16], strides = [1, 1]} : vector<16x96xf32> to vector<16x16xf32>
    %186 = tpu.concatenate %184, %185 in 0 : vector<16x16xf32>, vector<16x16xf32> -> vector<32x16xf32>
    %187 = vector.extract_strided_slice %183 {offsets = [0, 32], sizes = [16, 16], strides = [1, 1]} : vector<16x96xf32> to vector<16x16xf32>
    %188 = vector.extract_strided_slice %183 {offsets = [0, 48], sizes = [16, 16], strides = [1, 1]} : vector<16x96xf32> to vector<16x16xf32>
    %189 = tpu.concatenate %187, %188 in 0 : vector<16x16xf32>, vector<16x16xf32> -> vector<32x16xf32>
    %190 = vector.extract_strided_slice %183 {offsets = [0, 64], sizes = [16, 32], strides = [1, 1]} : vector<16x96xf32> to vector<16x32xf32>
    %c16_i32_55 = arith.constant 16 : i32
    %191 = vector.broadcast %c16_i32_55 : i32 to vector<16x32xi32>
    %192 = arith.cmpi slt, %32, %191 : vector<16x32xi32>
    %cst_56 = arith.constant 0.000000e+00 : f32
    %193 = vector.broadcast %cst_56 : f32 to vector<16x32xf32>
    %194 = arith.select %192, %190, %193 : vector<16x32xi1>, vector<16x32xf32>
    %c16_i32_57 = arith.constant 16 : i32
    %195 = vector.broadcast %c16_i32_57 : i32 to vector<16x32xi32>
    %196 = arith.cmpi sge, %32, %195 : vector<16x32xi32>
    %cst_58 = arith.constant 0.000000e+00 : f32
    %197 = vector.broadcast %cst_58 : f32 to vector<16x32xf32>
    %198 = arith.select %196, %190, %197 : vector<16x32xi1>, vector<16x32xf32>
    %199 = tpu.concatenate %194, %198 in 0 : vector<16x32xf32>, vector<16x32xf32> -> vector<32x32xf32>
    %200 = arith.truncf %186 : vector<32x16xf32> to vector<32x16xbf16>
    %201 = arith.truncf %189 : vector<32x16xf32> to vector<32x16xbf16>
    %cst_59 = arith.constant dense<0.000000e+00> : vector<32x32xf32>
    %202 = tpu.matmul %200, %201, %cst_59 {dimension_numbers = #tpu.dot_dimension_numbers<[1], [1], [0], [0], [0, 0, 1, 0], [], []>} : vector<32x16xbf16>, vector<32x16xbf16>, vector<32x32xf32> -> vector<32x32xf32>
    %cst_60 = arith.constant 2.500000e-01 : f32
    %203 = vector.broadcast %cst_60 : f32 to vector<32x32xf32>
    %204 = arith.mulf %202, %203 : vector<32x32xf32>
    %205 = arith.addf %204, %31 : vector<32x32xf32>
    %cst_61 = arith.constant dense<0xFF800000> : vector<32xf32>
    %206 = vector.multi_reduction <maximumf>, %205, %cst_61 [1] : vector<32x32xf32> to vector<32xf32>
    %207 = vector.shape_cast %206 : vector<32xf32> to vector<32x1xf32>
    %208 = vector.broadcast %207 : vector<32x1xf32> to vector<32x32xf32>
    %209 = arith.subf %205, %208 : vector<32x32xf32>
    %210 = math.exp %209 : vector<32x32xf32>
    %cst_62 = arith.constant dense<0.000000e+00> : vector<32xf32>
    %211 = vector.multi_reduction <add>, %210, %cst_62 [1] : vector<32x32xf32> to vector<32xf32>
    %212 = vector.shape_cast %211 : vector<32xf32> to vector<32x1xf32>
    %213 = tpu.reciprocal %212 {approx = true} : vector<32x1xf32> -> vector<32x1xf32>
    %214 = vector.broadcast %213 : vector<32x1xf32> to vector<32x32xf32>
    %215 = arith.mulf %210, %214 : vector<32x32xf32>
    %216 = arith.truncf %215 : vector<32x32xf32> to vector<32x32xbf16>
    %217 = arith.truncf %199 : vector<32x32xf32> to vector<32x32xbf16>
    %cst_63 = arith.constant dense<0.000000e+00> : vector<32x32xf32>
    %218 = tpu.matmul %216, %217, %cst_63 {dimension_numbers = #tpu.dot_dimension_numbers<[1], [0], [0], [1], [0, 0, 1, 1], [], []>} : vector<32x32xbf16>, vector<32x32xbf16>, vector<32x32xf32> -> vector<32x32xf32>
    %219 = vector.extract_strided_slice %218 {offsets = [0, 0], sizes = [16, 32], strides = [1, 1]} : vector<32x32xf32> to vector<16x32xf32>
    %220 = vector.extract_strided_slice %218 {offsets = [16, 0], sizes = [16, 32], strides = [1, 1]} : vector<32x32xf32> to vector<16x32xf32>
    %221 = arith.addf %219, %220 : vector<16x32xf32>
    %222 = arith.truncf %221 : vector<16x32xf32> to vector<16x32xbf16>
    %c304 = arith.constant 304 : index
    %c0_64 = arith.constant 0 : index
    %223 = vector.load %arg1[%c304, %c0_64] : memref<656x128xbf16, #tpu.memory_space<vmem>>, vector<32x32xbf16>
    %cst_65 = arith.constant dense<0.000000e+00> : vector<16x32xf32>
    %224 = tpu.matmul %222, %223, %cst_65 {dimension_numbers = #tpu.dot_dimension_numbers<[1], [0], [0], [1], [0, 0, 1, 1], [], []>} : vector<16x32xbf16>, vector<32x32xbf16>, vector<16x32xf32> -> vector<16x32xf32>
    %225 = arith.addf %153, %224 : vector<16x32xf32>
    %c13 = arith.constant 13 : index
    %c0_66 = arith.constant 0 : index
    %226 = vector.load %arg2[%c13, %c0_66] : memref<56x128xf32, #tpu.memory_space<vmem>>, vector<1x32xf32>
    %227 = vector.broadcast %226 : vector<1x32xf32> to vector<16x32xf32>
    %228 = arith.addf %225, %227 : vector<16x32xf32>
    %c10 = arith.constant 10 : index
    %c0_67 = arith.constant 0 : index
    %229 = vector.load %arg2[%c10, %c0_67] : memref<56x128xf32, #tpu.memory_space<vmem>>, vector<1x32xf32>
    %c11 = arith.constant 11 : index
    %c0_68 = arith.constant 0 : index
    %230 = vector.load %arg2[%c11, %c0_68] : memref<56x128xf32, #tpu.memory_space<vmem>>, vector<1x32xf32>
    %cst_69 = arith.constant dense<0.000000e+00> : vector<16xf32>
    %231 = vector.multi_reduction <add>, %228, %cst_69 [1] : vector<16x32xf32> to vector<16xf32>
    %232 = vector.shape_cast %231 : vector<16xf32> to vector<16x1xf32>
    %233 = arith.mulf %228, %228 : vector<16x32xf32>
    %cst_70 = arith.constant dense<0.000000e+00> : vector<16xf32>
    %234 = vector.multi_reduction <add>, %233, %cst_70 [1] : vector<16x32xf32> to vector<16xf32>
    %235 = vector.shape_cast %234 : vector<16xf32> to vector<16x1xf32>
    %cst_71 = arith.constant 3.125000e-02 : f32
    %236 = vector.broadcast %cst_71 : f32 to vector<16x1xf32>
    %237 = arith.mulf %232, %236 : vector<16x1xf32>
    %cst_72 = arith.constant 3.125000e-02 : f32
    %238 = vector.broadcast %cst_72 : f32 to vector<16x1xf32>
    %239 = arith.mulf %235, %238 : vector<16x1xf32>
    %240 = arith.mulf %237, %237 : vector<16x1xf32>
    %241 = arith.subf %239, %240 : vector<16x1xf32>
    %242 = vector.broadcast %237 : vector<16x1xf32> to vector<16x32xf32>
    %243 = arith.subf %228, %242 : vector<16x32xf32>
    %cst_73 = arith.constant 9.99999974E-6 : f32
    %244 = vector.broadcast %cst_73 : f32 to vector<16x1xf32>
    %245 = arith.addf %241, %244 : vector<16x1xf32>
    %246 = math.rsqrt %245 : vector<16x1xf32>
    %247 = vector.broadcast %246 : vector<16x1xf32> to vector<16x32xf32>
    %248 = arith.mulf %243, %247 : vector<16x32xf32>
    %249 = vector.broadcast %229 : vector<1x32xf32> to vector<16x32xf32>
    %250 = arith.mulf %248, %249 : vector<16x32xf32>
    %251 = vector.broadcast %230 : vector<1x32xf32> to vector<16x32xf32>
    %252 = arith.addf %250, %251 : vector<16x32xf32>
    %253 = arith.truncf %252 : vector<16x32xf32> to vector<16x32xbf16>
    %c336 = arith.constant 336 : index
    %c0_74 = arith.constant 0 : index
    %254 = vector.load %arg1[%c336, %c0_74] : memref<656x128xbf16, #tpu.memory_space<vmem>>, vector<32x128xbf16>
    %cst_75 = arith.constant dense<0.000000e+00> : vector<16x128xf32>
    %255 = tpu.matmul %253, %254, %cst_75 {dimension_numbers = #tpu.dot_dimension_numbers<[1], [0], [0], [1], [0, 0, 1, 1], [], []>} : vector<16x32xbf16>, vector<32x128xbf16>, vector<16x128xf32> -> vector<16x128xf32>
    %c14 = arith.constant 14 : index
    %c0_76 = arith.constant 0 : index
    %256 = vector.load %arg2[%c14, %c0_76] : memref<56x128xf32, #tpu.memory_space<vmem>>, vector<1x128xf32>
    %257 = vector.broadcast %256 : vector<1x128xf32> to vector<16x128xf32>
    %258 = arith.addf %255, %257 : vector<16x128xf32>
    %cst_77 = arith.constant 5.000000e-01 : f32
    %259 = vector.broadcast %cst_77 : f32 to vector<16x128xf32>
    %260 = arith.mulf %259, %258 : vector<16x128xf32>
    %cst_78 = arith.constant 0.707106769 : f32
    %261 = vector.broadcast %cst_78 : f32 to vector<16x128xf32>
    %262 = arith.mulf %258, %261 : vector<16x128xf32>
    %263 = math.erf %262 : vector<16x128xf32>
    %cst_79 = arith.constant 1.000000e+00 : f32
    %264 = vector.broadcast %cst_79 : f32 to vector<16x128xf32>
    %265 = arith.addf %264, %263 : vector<16x128xf32>
    %266 = arith.mulf %260, %265 : vector<16x128xf32>
    %267 = arith.truncf %266 : vector<16x128xf32> to vector<16x128xbf16>
    %c368 = arith.constant 368 : index
    %c0_80 = arith.constant 0 : index
    %268 = vector.load %arg1[%c368, %c0_80] : memref<656x128xbf16, #tpu.memory_space<vmem>>, vector<128x32xbf16>
    %cst_81 = arith.constant dense<0.000000e+00> : vector<16x32xf32>
    %269 = tpu.matmul %267, %268, %cst_81 {dimension_numbers = #tpu.dot_dimension_numbers<[1], [0], [0], [1], [0, 0, 1, 1], [], []>} : vector<16x128xbf16>, vector<128x32xbf16>, vector<16x32xf32> -> vector<16x32xf32>
    %c15 = arith.constant 15 : index
    %c0_82 = arith.constant 0 : index
    %270 = vector.load %arg2[%c15, %c0_82] : memref<56x128xf32, #tpu.memory_space<vmem>>, vector<1x32xf32>
    %271 = vector.broadcast %270 : vector<1x32xf32> to vector<16x32xf32>
    %272 = arith.addf %269, %271 : vector<16x32xf32>
    %273 = arith.addf %228, %272 : vector<16x32xf32>
    %c16 = arith.constant 16 : index
    %c0_83 = arith.constant 0 : index
    %274 = vector.load %arg2[%c16, %c0_83] : memref<56x128xf32, #tpu.memory_space<vmem>>, vector<1x32xf32>
    %c17 = arith.constant 17 : index
    %c0_84 = arith.constant 0 : index
    %275 = vector.load %arg2[%c17, %c0_84] : memref<56x128xf32, #tpu.memory_space<vmem>>, vector<1x32xf32>
    %cst_85 = arith.constant dense<0.000000e+00> : vector<16xf32>
    %276 = vector.multi_reduction <add>, %273, %cst_85 [1] : vector<16x32xf32> to vector<16xf32>
    %277 = vector.shape_cast %276 : vector<16xf32> to vector<16x1xf32>
    %278 = arith.mulf %273, %273 : vector<16x32xf32>
    %cst_86 = arith.constant dense<0.000000e+00> : vector<16xf32>
    %279 = vector.multi_reduction <add>, %278, %cst_86 [1] : vector<16x32xf32> to vector<16xf32>
    %280 = vector.shape_cast %279 : vector<16xf32> to vector<16x1xf32>
    %cst_87 = arith.constant 3.125000e-02 : f32
    %281 = vector.broadcast %cst_87 : f32 to vector<16x1xf32>
    %282 = arith.mulf %277, %281 : vector<16x1xf32>
    %cst_88 = arith.constant 3.125000e-02 : f32
    %283 = vector.broadcast %cst_88 : f32 to vector<16x1xf32>
    %284 = arith.mulf %280, %283 : vector<16x1xf32>
    %285 = arith.mulf %282, %282 : vector<16x1xf32>
    %286 = arith.subf %284, %285 : vector<16x1xf32>
    %287 = vector.broadcast %282 : vector<16x1xf32> to vector<16x32xf32>
    %288 = arith.subf %273, %287 : vector<16x32xf32>
    %cst_89 = arith.constant 9.99999974E-6 : f32
    %289 = vector.broadcast %cst_89 : f32 to vector<16x1xf32>
    %290 = arith.addf %286, %289 : vector<16x1xf32>
    %291 = math.rsqrt %290 : vector<16x1xf32>
    %292 = vector.broadcast %291 : vector<16x1xf32> to vector<16x32xf32>
    %293 = arith.mulf %288, %292 : vector<16x32xf32>
    %294 = vector.broadcast %274 : vector<1x32xf32> to vector<16x32xf32>
    %295 = arith.mulf %293, %294 : vector<16x32xf32>
    %296 = vector.broadcast %275 : vector<1x32xf32> to vector<16x32xf32>
    %297 = arith.addf %295, %296 : vector<16x32xf32>
    %298 = arith.truncf %297 : vector<16x32xf32> to vector<16x32xbf16>
    %c496 = arith.constant 496 : index
    %c0_90 = arith.constant 0 : index
    %299 = vector.load %arg1[%c496, %c0_90] : memref<656x128xbf16, #tpu.memory_space<vmem>>, vector<32x128xbf16>
    %cst_91 = arith.constant dense<0.000000e+00> : vector<16x128xf32>
    %300 = tpu.matmul %298, %299, %cst_91 {dimension_numbers = #tpu.dot_dimension_numbers<[1], [0], [0], [1], [0, 0, 1, 1], [], []>} : vector<16x32xbf16>, vector<32x128xbf16>, vector<16x128xf32> -> vector<16x128xf32>
    %c18 = arith.constant 18 : index
    %c0_92 = arith.constant 0 : index
    %301 = vector.load %arg2[%c18, %c0_92] : memref<56x128xf32, #tpu.memory_space<vmem>>, vector<1x128xf32>
    %302 = vector.broadcast %301 : vector<1x128xf32> to vector<16x128xf32>
    %303 = arith.addf %300, %302 : vector<16x128xf32>
    %c96_i32 = arith.constant 96 : i32
    %304 = vector.broadcast %c96_i32 : i32 to vector<16x128xi32>
    %305 = arith.cmpi slt, %33, %304 : vector<16x128xi32>
    %cst_93 = arith.constant 0.000000e+00 : f32
    %306 = vector.broadcast %cst_93 : f32 to vector<16x128xf32>
    %307 = arith.maximumf %303, %306 : vector<16x128xf32>
    %308 = arith.select %305, %307, %303 : vector<16x128xi1>, vector<16x128xf32>
    %309 = arith.truncf %308 : vector<16x128xf32> to vector<16x128xbf16>
    %c528 = arith.constant 528 : index
    %c0_94 = arith.constant 0 : index
    %310 = vector.load %arg1[%c528, %c0_94] : memref<656x128xbf16, #tpu.memory_space<vmem>>, vector<128x128xbf16>
    %cst_95 = arith.constant dense<0.000000e+00> : vector<16x128xf32>
    %311 = tpu.matmul %309, %310, %cst_95 {dimension_numbers = #tpu.dot_dimension_numbers<[1], [0], [0], [1], [0, 0, 1, 1], [], []>} : vector<16x128xbf16>, vector<128x128xbf16>, vector<16x128xf32> -> vector<16x128xf32>
    %c19 = arith.constant 19 : index
    %c0_96 = arith.constant 0 : index
    %312 = vector.load %arg2[%c19, %c0_96] : memref<56x128xf32, #tpu.memory_space<vmem>>, vector<1x128xf32>
    %313 = vector.broadcast %312 : vector<1x128xf32> to vector<16x128xf32>
    %314 = arith.addf %311, %313 : vector<16x128xf32>
    %c0_97 = arith.constant 0 : index
    %c0_98 = arith.constant 0 : index
    %315 = vector.load %arg3[%c0_97, %c0_98] : memref<16x128xf32, #tpu.memory_space<vmem>>, vector<16x128xf32>
    tpu.vector_store %arg3[%c0_97, %c0_98], %314 {strides = array<i32>} : memref<16x128xf32, #tpu.memory_space<vmem>>, vector<16x128xf32>,
    return
  }
}

</mosaic_0001>

<llo_original>
// kernel: world_model_forward.1
$region0: #{world_model_forward.1}
  #allocation0 [shape = 'u32[]', space=smem, size = 0x4, offset = 0x4, fixed_abs, tag = 'smem constant byte address 0x4 - core index']
  #allocation1 [shape = 'u32[72,128]{1,0:T(1,128)}', space=vmem, size = 0x9000, scoped, tag = 'internal scratch']
  %s0 = inlined_call_operand.vmem [shape: s32[16,1], index: 0, kind: input, shape index: {}]
  %s1 = inlined_call_operand.hbm [shape: bf16[656,128], index: 1, kind: input, shape index: {}]
  %s2 = inlined_call_operand.hbm [shape: f32[56,128], index: 2, kind: input, shape index: {}]
  %s3 = inlined_call_operand.vmem [shape: f32[16,128], index: 3, kind: output, shape index: {}]
  %s4 = sld [smem:[#allocation0]]
  $region30: #{world_model_forward.1} parent=0
    _
  %s6 = ssub.s32 1, %s4
  %s7 = scalar_select 0, %s6, %s4
  $region1: #{world_model_forward.1} parent=0
    #allocation2 [shape = 'u8[167936]{0}', space=vmem, size = 0x29000, scoped, tag = 'input window, operand 1, single buffered']
    #allocation3 [shape = 's32[1]{0}', space=sflag, size = 0x4, scoped, tag = 'scoped memory for world_model_forward.1']
    #allocation4 [shape = 'u8[28672]{0}', space=vmem, size = 0x7000, scoped, tag = 'input window, operand 2, single buffered']
    #allocation5 [shape = 's32[1]{0}', space=sflag, size = 0x4, scoped, tag = 'scoped memory for world_model_forward.1']
    %8 = vsyncpa [#allocation3], 0
    %9 = vsyncpa [#allocation5], 0
    // Predicated region
    $region2: #{world_model_forward.1} parent=1 // pred_check
      _
    $region3: #{world_model_forward.1} parent=1 // pred_check_branch
      %11 = sbr.rel (0) target = $region5
    $region4: #{world_model_forward.1} parent=1 // pred_region
      _
    $region5: #{world_model_forward.1} parent=1 // pred_fallthru
      _
    // Predicated region
    $region6: #{world_model_forward.1} parent=1 // pred_check
      _
    $region7: #{world_model_forward.1} parent=1 // pred_check_branch
      %13 = sbr.rel (0) target = $region9
    $region8: #{world_model_forward.1} parent=1 // pred_region
      %15 = vsyncadd [#allocation3], 0
      %s16 = sshll.u32 %s1, 4
      %s17 = int_to_ptr.hbm [resolvable:$true] %s16
      %s18 = sshll.u32 [#allocation2], 4
      %s19 = int_to_ptr.vmem [resolvable:$true] %s18
      %24 = dma.hbm_to_vmem [thread:$0]  %s17, 5248, %s19, [#allocation3], 64, 64, 4
    $region9: #{world_model_forward.1} parent=1 // pred_fallthru
      _
    // Predicated region
    $region10: #{world_model_forward.1} parent=1 // pred_check
      _
    $region11: #{world_model_forward.1} parent=1 // pred_check_branch
      %26 = sbr.rel (0) target = $region13
    $region12: #{world_model_forward.1} parent=1 // pred_region
      %28 = vsyncadd [#allocation5], 0
      %s29 = sshll.u32 %s2, 4
      %s30 = int_to_ptr.hbm [resolvable:$true] %s29
      %s31 = sshll.u32 [#allocation4], 4
      %s32 = int_to_ptr.vmem [resolvable:$true] %s31
      %37 = dma.hbm_to_vmem [thread:$0]  %s30, 896, %s32, [#allocation5], 128, 128, 8
    $region13: #{world_model_forward.1} parent=1 // pred_fallthru
      _
    // Predicated region
    $region14: #{world_model_forward.1} parent=1 // pred_check
      _
    $region15: #{world_model_forward.1} parent=1 // pred_check_branch
      %39 = sbr.rel (0) target = $region17
    $region16: #{world_model_forward.1} parent=1 // pred_region
      %41 = dma.done [#allocation3], 5248
    $region17: #{world_model_forward.1} parent=1 // pred_fallthru
      _
    // Predicated region
    $region18: #{world_model_forward.1} parent=1 // pred_check
      _
    $region19: #{world_model_forward.1} parent=1 // pred_check_branch
      %43 = sbr.rel (0) target = $region21
    $region20: #{world_model_forward.1} parent=1 // pred_region
      %45 = dma.done [#allocation5], 896
    $region21: #{world_model_forward.1} parent=1 // pred_fallthru
      _
    %v47 = vld [vmem:[%s0] sm:$0xff]
    %v48 = vld [vmem:[%s0 + $0x8] sm:$0xff]
    %v49 = vlaneseq
    %v50 = vand.u32 %v49, 127
    %v51 = vlaneseq
    %v52 = vshrl.u32 %v51, 7
    %v53 = vadd.s32 %v52, 8
    %vm54 = vcmp.lt.s32.totalorder %v52, 0
    %v55 = vsub.s32 0, %v52
    %v56 = vsel %vm54, %v55, %v52
    %v57 = vshrl.u32 %v56, 3
    %v58 = vand.u32 %v56, 7
    %v59 = vsub.s32 0, %v58
    %v60 = vsel %vm54, %v59, %v58
    %vm61 = vcmp.lt.s32.totalorder %v53, 0
    %v62 = vsub.s32 0, %v53
    %v63 = vsel %vm61, %v62, %v53
    %v64 = vshrl.u32 %v63, 3
    %v65 = vand.u32 %v63, 7
    %v66 = vsub.s32 0, %v65
    %v67 = vsel %vm61, %v66, %v65
    %vm68 = vcmp.ne.s32.totalorder %v60, 0
    %vm69 = vcmp.ne.s32.totalorder %v67, 0
    %vm70 = vcmp.lt.s32.totalorder %v60, 0
    %vm71 = vcmp.lt.s32.totalorder %v67, 0
    %vm72 = vmand %vm70, %vm68
    %vm73 = vmand %vm71, %vm69
    %v74 = vadd.s32 %v60, 8
    %v75 = vadd.s32 %v67, 8
    %v76 = vsel %vm72, %v74, %v60
    %v77 = vsel %vm73, %v75, %v67
    %v78 = vadd.s32 %v76, 20
    %v79 = vadd.s32 %v77, 20
    %80 = vset.pattern.permute.xlu0 0
    %81 = vperm.xlu0 %80, %v47
    %v82 = vpop.permute.xlu0 %81
    %83 = vset.pattern.permute.xlu0 0
    %84 = vperm.xlu0 %83, %v48
    %v85 = vpop.permute.xlu0 %84
    %vm86 = vcmp.eq.s32.totalorder %v50, %v82
    %vm87 = vcmp.eq.s32.totalorder %v50, %v85
    %vm88 = vcmp.eq.s32.totalorder %v50, %v78
    %vm89 = vcmp.eq.s32.totalorder %v50, %v79
    %vm90 = vmor %vm86, %vm88
    %vm91 = vmor %vm87, %vm89
    %v92 = vsel %vm90, 1, 0
    %v93 = vsel %vm91, 1, 0
    %v94 = vcvt.s32.f32 %v92
    %v95 = vcvt.s32.f32 %v93
    %v96 = vpack.c.bf16 %v95, %v94
    %v97 = vld [vmem:[#allocation2] sm:$0xf]
    %v98 = vld [vmem:[#allocation2 + $0x4] sm:$0xf]
    %v99 = vld [vmem:[#allocation2 + $0x8] sm:$0xf]
    %v100 = vld [vmem:[#allocation2 + $0xc] sm:$0xf]
    %v101 = vld [vmem:[#allocation2 + $0x10] sm:$0xf]
    %v102 = vld [vmem:[#allocation2 + $0x14] sm:$0xf]
    %v109 = vunpack.c.l.b16 %v97
    %v110 = vunpack.c.l.b16 %v98
    %v111 = vunpack.c.l.b16 %v99
    %v112 = vunpack.c.l.b16 %v100
    %v113 = vunpack.c.l.b16 %v101
    %v114 = vunpack.c.l.b16 %v102
    %v115 = vpack.c.b16 %v110, %v109
    %v116 = vpack.c.b16 %v112, %v111
    %v117 = vpack.c.b16 %v114, %v113
    %vm121 = vcmask 392192
    %v123 = vsel %vm121, %v96, 0
    %125 = vmatpush.bf16.msra.mxu0 0
    %126 = vmatpush.bf16.msra.mxu0 0
    %127 = vmatpush.bf16.msra.mxu0 0
    %128 = vmatpush.bf16.msra.mxu0 0
    %129 = vmatpush.bf16.msra.mxu0 0
    %130 = vmatpush.bf16.msra.mxu0 %v117
    %131 = vmatpush.bf16.msra.mxu0 %v116
    %132 = vmatpush.bf16.msra.mxu0 %v115
    %133 = vmatmul.bf16.gmra.mxu0 %v123
    %v134 = vpop.f32.mrf.mxu0
    %v135 = vadd.f32 0.0, %v134
    %v136 = vpop.f32.mrf.mxu0
    %v137 = vadd.f32 0.0, %v136
    %138 = vdwg.mxu0
    %v139 = vld [vmem:[#allocation4 + $0x18] sm:$0xff]
    %v140 = vld [vmem:[#allocation4 + $0x20] sm:$0xff]
    %v141 = vld [vmem:[#allocation4 + $0x28] sm:$0xff]
    %v142 = vld [vmem:[#allocation4 + $0x30] sm:$0xff]
    %v143 = vld [vmem:[#allocation4] sm:$0x1]
    %v144 = vld [vmem:[#allocation4 + $0x1] sm:$0x1]
    %vm145 = vcmask 261120
    %v146 = vsel %vm145, %v135, 0.0
    %147 = vadd.xlane.f32.xlu0 %v146
    %v148 = vpop.xlane.xlu0 %147
    %v149 = vsel %vm145, %v137, 0.0
    %150 = vadd.xlane.f32.xlu0 %v149
    %v151 = vpop.xlane.xlu0 %150
    %v152 = vmul.f32 %v135, %v135
    %v153 = vmul.f32 %v137, %v137
    %v154 = vsel %vm145, %v152, 0.0
    %155 = vadd.xlane.f32.xlu0 %v154
    %v156 = vpop.xlane.xlu0 %155
    %v157 = vsel %vm145, %v153, 0.0
    %158 = vadd.xlane.f32.xlu0 %v157
    %v159 = vpop.xlane.xlu0 %158
    %v160 = vmul.f32 %v148, 0.03125
    %v161 = vmul.f32 %v151, 0.03125
    %v162 = vmul.f32 %v156, 0.03125
    %v163 = vmul.f32 %v159, 0.03125
    %v164 = vmul.f32 %v160, %v160
    %v165 = vmul.f32 %v161, %v161
    %v166 = vsub.f32 %v162, %v164
    %v167 = vsub.f32 %v163, %v165
    %v168 = vsub.f32 %v135, %v160
    %v169 = vsub.f32 %v137, %v161
    %v170 = vadd.f32 %v166, 1e-05
    %v171 = vadd.f32 %v167, 1e-05
    %v172 = vrsqrt.pop %v170
    %v173 = vmul.f32 %v172, %v170
    %v174 = vmul.f32 %v173, %v172
    %v175 = vmul.f32 0.5, %v174
    %v176 = vsub.f32 1.5, %v175
    %v177 = vmul.f32 %v172, %v176
    %vm178 = vweird.f32 %v170
    %vm179 = vweird.f32 %v172
    %vm180 = vmor %vm178, %vm179
    %v181 = vsel %vm180, %v172, %v177
    %v182 = vrsqrt.pop %v171
    %v183 = vmul.f32 %v182, %v171
    %v184 = vmul.f32 %v183, %v182
    %v185 = vmul.f32 0.5, %v184
    %v186 = vsub.f32 1.5, %v185
    %v187 = vmul.f32 %v182, %v186
    %vm188 = vweird.f32 %v171
    %vm189 = vweird.f32 %v182
    %vm190 = vmor %vm188, %vm189
    %v191 = vsel %vm190, %v182, %v187
    %v192 = vmul.f32 %v168, %v181
    %v193 = vmul.f32 %v169, %v191
    %v194 = vperm.slane %v143, 0
    %v195 = vmul.f32 %v192, %v194
    %v196 = vmul.f32 %v193, %v194
    %v197 = vperm.slane %v144, 0
    %v198 = vadd.f32 %v195, %v197
    %v199 = vadd.f32 %v196, %v197
    %v200 = vpack.c.bf16 %v199, %v198
    %v201 = vld [vmem:[#allocation2 + $0x18] sm:$0xf]
    %v202 = vld [vmem:[#allocation2 + $0x1c] sm:$0xf]
    %v203 = vld [vmem:[#allocation2 + $0x20] sm:$0xf]
    %v204 = vld [vmem:[#allocation2 + $0x24] sm:$0xf]
    %v205 = vld [vmem:[#allocation4 + $0x4] sm:$0x1]
    %v206 = vperm.slane %v205, 0
    %v211 = vunpack.c.l.b16 %v201
    %v212 = vunpack.c.l.b16 %v202
    %v213 = vunpack.c.l.b16 %v203
    %v214 = vunpack.c.l.b16 %v204
    %v215 = vpack.c.b16 %v212, %v211
    %v216 = vpack.c.b16 %v214, %v213
    %v220 = vsel %vm145, %v200, 0
    %222 = vmatpush.bf16.msra.mxu0 0
    %223 = vmatpush.bf16.msra.mxu0 0
    %224 = vmatpush.bf16.msra.mxu0 0
    %225 = vmatpush.bf16.msra.mxu0 0
    %226 = vmatpush.bf16.msra.mxu0 0
    %227 = vmatpush.bf16.msra.mxu0 0
    %228 = vmatpush.bf16.msra.mxu0 %v216
    %229 = vmatpush.bf16.msra.mxu0 %v215
    %230 = vmatmul.bf16.gmra.mxu0 %v220
    %v231 = vpop.f32.mrf.mxu0
    %v232 = vadd.f32 %v206, %v231
    %v233 = vpop.f32.mrf.mxu0
    %v234 = vadd.f32 %v206, %v233
    %235 = vdwg.mxu0
    %238 = vrot.lane.b32.xlu0 %v232, 112
    %v239 = vpop.permute.xlu0 %238
    %240 = vrot.lane.b32.xlu0 %v234, 112
    %v241 = vpop.permute.xlu0 %240
    %vm244 = vcmp.lt.s32.totalorder %v50, 16
    %245 = vrot.lane.b32.xlu0 %v232, 64
    %v246 = vpop.permute.xlu0 %245
    %247 = vrot.lane.b32.xlu0 %v234, 64
    %v248 = vpop.permute.xlu0 %247
    %v251 = vsel %vm244, %v246, 0.0
    %v252 = vsel %vm244, %v248, 0.0
    %vm253 = vcmp.ge.s32.totalorder %v50, 16
    %v254 = vsel %vm253, %v246, 0.0
    %v255 = vsel %vm253, %v248, 0.0
    %v256 = vpack.c.bf16 %v234, %v232
    %v257 = vpack.c.bf16 %v241, %v239
    %260 = vrot.lane.b32.xlu0 %v256, 96
    %v261 = vpop.permute.xlu0 %260
    %262 = vrot.lane.b32.xlu0 %v257, 96
    %v263 = vpop.permute.xlu0 %262
    %vm264 = vcmask 130048
    %v266 = vsel %vm264, %v256, 0
    %v269 = vsel %vm264, %v257, 0
    %v272 = vsel %vm264, %v261, 0
    %v275 = vsel %vm264, %v263, 0
    %277 = vmatpush.bf16.xpose.msra.mxu0 0
    %278 = vmatpush.bf16.xpose.msra.mxu0 0
    %279 = vmatpush.bf16.xpose.msra.mxu0 0
    %280 = vmatpush.bf16.xpose.msra.mxu0 0
    %281 = vmatpush.bf16.xpose.msra.mxu0 0
    %282 = vmatpush.bf16.xpose.msra.mxu0 0
    %283 = vmatpush.bf16.xpose.msra.mxu0 %v275
    %284 = vmatpush.bf16.xpose.msra.mxu0 %v272
    %285 = vmatmul.bf16.gmra.mxu0 %v266
    %v286 = vpop.f32.mrf.mxu0
    %v287 = vadd.f32 0.0, %v286
    %v288 = vpop.f32.mrf.mxu0
    %v289 = vadd.f32 0.0, %v288
    %290 = vmatmul.bf16.gmra.mxu0 %v269
    %v291 = vpop.f32.mrf.mxu0
    %v292 = vadd.f32 0.0, %v291
    %v293 = vpop.f32.mrf.mxu0
    %v294 = vadd.f32 0.0, %v293
    %295 = vdwg.mxu0
    %v296 = vmul.f32 %v287, 0.25
    %v297 = vmul.f32 %v289, 0.25
    %v298 = vmul.f32 %v292, 0.25
    %v299 = vmul.f32 %v294, 0.25
    %v300 = vadd.f32 %v296, %v139
    %v301 = vadd.f32 %v297, %v140
    %v302 = vadd.f32 %v298, %v141
    %v303 = vadd.f32 %v299, %v142
    %v304 = vsel %vm145, %v300, -inf
    %305 = vmax.xlane.f32.xlu0 %v304
    %v306 = vpop.xlane.xlu0 %305
    %v307 = vsel %vm145, %v301, -inf
    %308 = vmax.xlane.f32.xlu0 %v307
    %v309 = vpop.xlane.xlu0 %308
    %v310 = vsel %vm145, %v302, -inf
    %311 = vmax.xlane.f32.xlu0 %v310
    %v312 = vpop.xlane.xlu0 %311
    %v313 = vsel %vm145, %v303, -inf
    %314 = vmax.xlane.f32.xlu0 %v313
    %v315 = vpop.xlane.xlu0 %314
    %v316 = vsub.f32 %v300, %v306
    %v317 = vsub.f32 %v301, %v309
    %v318 = vsub.f32 %v302, %v312
    %v319 = vsub.f32 %v303, %v315
    %v320 = vmul.f32 %v316, 1.442695
    %v321 = vpow.pop %v320
    %v322 = vmul.f32 %v317, 1.442695
    %v323 = vpow.pop %v322
    %v324 = vmul.f32 %v318, 1.442695
    %v325 = vpow.pop %v324
    %v326 = vmul.f32 %v319, 1.442695
    %v327 = vpow.pop %v326
    %v328 = vsel %vm145, %v321, 0.0
    %329 = vadd.xlane.f32.xlu0 %v328
    %v330 = vpop.xlane.xlu0 %329
    %v331 = vsel %vm145, %v323, 0.0
    %332 = vadd.xlane.f32.xlu0 %v331
    %v333 = vpop.xlane.xlu0 %332
    %v334 = vsel %vm145, %v325, 0.0
    %335 = vadd.xlane.f32.xlu0 %v334
    %v336 = vpop.xlane.xlu0 %335
    %v337 = vsel %vm145, %v327, 0.0
    %338 = vadd.xlane.f32.xlu0 %v337
    %v339 = vpop.xlane.xlu0 %338
    %v340 = vrcp.pop %v330
    %v341 = vrcp.pop %v333
    %v342 = vrcp.pop %v336
    %v343 = vrcp.pop %v339
    %v344 = vmul.f32 %v321, %v340
    %v345 = vmul.f32 %v323, %v341
    %v346 = vmul.f32 %v325, %v342
    %v347 = vmul.f32 %v327, %v343
    %v348 = vpack.c.bf16 %v345, %v344
    %v349 = vpack.c.bf16 %v347, %v346
    %v350 = vpack.c.bf16 %v252, %v251
    %v351 = vpack.c.bf16 %v255, %v254
    %v353 = vsel %vm145, %v348, 0
    %v356 = vsel %vm145, %v349, 0
    %358 = vmatpush.bf16.msra.mxu0 0
    %359 = vmatpush.bf16.msra.mxu0 0
    %360 = vmatpush.bf16.msra.mxu0 0
    %361 = vmatpush.bf16.msra.mxu0 0
    %362 = vmatpush.bf16.msra.mxu0 0
    %363 = vmatpush.bf16.msra.mxu0 0
    %364 = vmatpush.bf16.msra.mxu0 %v351
    %365 = vmatpush.bf16.msra.mxu0 %v350
    %366 = vmatmul.bf16.gmra.mxu0 %v353
    %v367 = vpop.f32.mrf.mxu0
    %v368 = vadd.f32 0.0, %v367
    %v369 = vpop.f32.mrf.mxu0
    %v370 = vadd.f32 0.0, %v369
    %371 = vmatmul.bf16.gmra.mxu0 %v356
    %v372 = vpop.f32.mrf.mxu0
    %v373 = vadd.f32 0.0, %v372
    %v374 = vpop.f32.mrf.mxu0
    %v375 = vadd.f32 0.0, %v374
    %376 = vdwg.mxu0
    %v377 = vadd.f32 %v368, %v373
    %v378 = vadd.f32 %v370, %v375
    %v379 = vpack.c.bf16 %v378, %v377
    %v380 = vld [vmem:[#allocation2 + $0x28] sm:$0xf]
    %v381 = vld [vmem:[#allocation2 + $0x2c] sm:$0xf]
    %v382 = vld [vmem:[#allocation2 + $0x30] sm:$0xf]
    %v383 = vld [vmem:[#allocation2 + $0x34] sm:$0xf]
    %v388 = vunpack.c.l.b16 %v380
    %v389 = vunpack.c.l.b16 %v381
    %v390 = vunpack.c.l.b16 %v382
    %v391 = vunpack.c.l.b16 %v383
    %v392 = vpack.c.b16 %v389, %v388
    %v393 = vpack.c.b16 %v391, %v390
    %v397 = vsel %vm145, %v379, 0
    %399 = vmatpush.bf16.msra.mxu0 0
    %400 = vmatpush.bf16.msra.mxu0 0
    %401 = vmatpush.bf16.msra.mxu0 0
    %402 = vmatpush.bf16.msra.mxu0 0
    %403 = vmatpush.bf16.msra.mxu0 0
    %404 = vmatpush.bf16.msra.mxu0 0
    %405 = vmatpush.bf16.msra.mxu0 %v393
    %406 = vmatpush.bf16.msra.mxu0 %v392
    %407 = vmatmul.bf16.gmra.mxu0 %v397
    %v408 = vpop.f32.mrf.mxu0
    %v409 = vadd.f32 0.0, %v408
    %v410 = vpop.f32.mrf.mxu0
    %v411 = vadd.f32 0.0, %v410
    %412 = vdwg.mxu0
    %v413 = vadd.f32 %v135, %v409
    %v414 = vadd.f32 %v137, %v411
    %v415 = vld [vmem:[#allocation4 + $0x5] sm:$0x1]
    %v416 = vperm.slane %v415, 0
    %v417 = vadd.f32 %v413, %v416
    %v418 = vadd.f32 %v414, %v416
    %v419 = vld [vmem:[#allocation4 + $0x2] sm:$0x1]
    %v420 = vld [vmem:[#allocation4 + $0x3] sm:$0x1]
    %v421 = vsel %vm145, %v417, 0.0
    %422 = vadd.xlane.f32.xlu0 %v421
    %v423 = vpop.xlane.xlu0 %422
    %v424 = vsel %vm145, %v418, 0.0
    %425 = vadd.xlane.f32.xlu0 %v424
    %v426 = vpop.xlane.xlu0 %425
    %v427 = vmul.f32 %v417, %v417
    %v428 = vmul.f32 %v418, %v418
    %v429 = vsel %vm145, %v427, 0.0
    %430 = vadd.xlane.f32.xlu0 %v429
    %v431 = vpop.xlane.xlu0 %430
    %v432 = vsel %vm145, %v428, 0.0
    %433 = vadd.xlane.f32.xlu0 %v432
    %v434 = vpop.xlane.xlu0 %433
    %v435 = vmul.f32 %v423, 0.03125
    %v436 = vmul.f32 %v426, 0.03125
    %v437 = vmul.f32 %v431, 0.03125
    %v438 = vmul.f32 %v434, 0.03125
    %v439 = vmul.f32 %v435, %v435
    %v440 = vmul.f32 %v436, %v436
    %v441 = vsub.f32 %v437, %v439
    %v442 = vsub.f32 %v438, %v440
    %v443 = vsub.f32 %v417, %v435
    %v444 = vsub.f32 %v418, %v436
    %v445 = vadd.f32 %v441, 1e-05
    %v446 = vadd.f32 %v442, 1e-05
    %v447 = vrsqrt.pop %v445
    %v448 = vmul.f32 %v447, %v445
    %v449 = vmul.f32 %v448, %v447
    %v450 = vmul.f32 0.5, %v449
    %v451 = vsub.f32 1.5, %v450
    %v452 = vmul.f32 %v447, %v451
    %vm453 = vweird.f32 %v445
    %vm454 = vweird.f32 %v447
    %vm455 = vmor %vm453, %vm454
    %v456 = vsel %vm455, %v447, %v452
    %v457 = vrsqrt.pop %v446
    %v458 = vmul.f32 %v457, %v446
    %v459 = vmul.f32 %v458, %v457
    %v460 = vmul.f32 0.5, %v459
    %v461 = vsub.f32 1.5, %v460
    %v462 = vmul.f32 %v457, %v461
    %vm463 = vweird.f32 %v446
    %vm464 = vweird.f32 %v457
    %vm465 = vmor %vm463, %vm464
    %v466 = vsel %vm465, %v457, %v462
    %v467 = vmul.f32 %v443, %v456
    %v468 = vmul.f32 %v444, %v466
    %v469 = vperm.slane %v419, 0
    %v470 = vmul.f32 %v467, %v469
    %v471 = vmul.f32 %v468, %v469
    %v472 = vperm.slane %v420, 0
    %v473 = vadd.f32 %v470, %v472
    %v474 = vadd.f32 %v471, %v472
    %v475 = vpack.c.bf16 %v474, %v473
    %v476 = vld [vmem:[#allocation2 + $0x38] sm:$0xf]
    %v477 = vld [vmem:[#allocation2 + $0x3c] sm:$0xf]
    %v478 = vld [vmem:[#allocation2 + $0x40] sm:$0xf]
    %v479 = vld [vmem:[#allocation2 + $0x44] sm:$0xf]
    %v480 = vld [vmem:[#allocation4 + $0x6] sm:$0x1]
    %v481 = vperm.slane %v480, 0
    %v486 = vunpack.c.l.b16 %v476
    %v487 = vunpack.c.l.b16 %v477
    %v488 = vunpack.c.l.b16 %v478
    %v489 = vunpack.c.l.b16 %v479
    %v490 = vpack.c.b16 %v487, %v486
    %v491 = vpack.c.b16 %v489, %v488
    %v495 = vsel %vm145, %v475, 0
    %497 = vmatpush.bf16.msra.mxu0 0
    %498 = vmatpush.bf16.msra.mxu0 0
    %499 = vmatpush.bf16.msra.mxu0 0
    %500 = vmatpush.bf16.msra.mxu0 0
    %501 = vmatpush.bf16.msra.mxu0 0
    %502 = vmatpush.bf16.msra.mxu0 0
    %503 = vmatpush.bf16.msra.mxu0 %v491
    %504 = vmatpush.bf16.msra.mxu0 %v490
    %505 = vmatmul.bf16.gmra.mxu0 %v495
    %v506 = vpop.f32.mrf.mxu0
    %v507 = vadd.f32 %v481, %v506
    %v508 = vpop.f32.mrf.mxu0
    %v509 = vadd.f32 %v481, %v508
    %510 = vdwg.mxu0
    %v511 = vmul.f32 %v507, 0.5
    %v512 = vmul.f32 %v509, 0.5
    %v513 = vmul.f32 %v507, 0.70710677
    %v514 = vmul.f32 %v509, 0.70710677
    %v515 = vmul.f32 %v513, %v513
    %v516 = vmin.f32 16.0, %v515
    %v517 = vmul.f32 %v516, 2.1237322e-06
    %v518 = vadd.f32 %v517, 0.00028619796
    %v519 = vmul.f32 %v516, %v518
    %v520 = vadd.f32 %v519, 0.0036580483
    %v521 = vmul.f32 %v516, %v520
    %v522 = vadd.f32 %v521, 0.05243302
    %v523 = vmul.f32 %v516, %v522
    %v524 = vadd.f32 %v523, 0.18741608
    %v525 = vmul.f32 %v516, %v524
    %v526 = vadd.f32 %v525, 1.1283791
    %v527 = vmul.f32 %v513, %v526
    %v528 = vmul.f32 %v516, 3.8918573e-05
    %v529 = vadd.f32 %v528, 0.001143296
    %v530 = vmul.f32 %v516, %v529
    %v531 = vadd.f32 %v530, 0.014752088
    %v532 = vmul.f32 %v516, %v531
    %v533 = vadd.f32 %v532, 0.112945676
    %v534 = vmul.f32 %v516, %v533
    %v535 = vadd.f32 %v534, 0.4994258
    %v536 = vmul.f32 %v516, %v535
    %v537 = vadd.f32 %v536, 1.0
    %v538 = vrcp.pop %v537
    %v539 = vmul.f32 %v537, %v538
    %v540 = vsub.f32 1.0, %v539
    %v541 = vmul.f32 %v538, %v540
    %v542 = vadd.f32 %v538, %v541
    %vm543 = vweird.f32 %v537
    %vm544 = vweird.f32 %v538
    %vm545 = vmor %vm543, %vm544
    %v546 = vsel %vm545, %v538, %v542
    %v547 = vand.u32 2147483647, %v537
    %vm548 = vcmp.eq.f32.partialorder %v547, 8.507059e+37
    %v549 = vand.u32 %v537, 2147483648
    %v550 = vor.u32 1.1754944e-38, %v549
    %v551 = vsel %vm548, %v550, %v546
    %v552 = vmul.f32 %v527, %v551
    %v553 = vmin.f32 %v552, 1.0
    %v554 = vmax.f32 %v553, -1.0
    %v555 = vmul.f32 %v514, %v514
    %v556 = vmin.f32 16.0, %v555
    %v557 = vmul.f32 %v556, 2.1237322e-06
    %v558 = vadd.f32 %v557, 0.00028619796
    %v559 = vmul.f32 %v556, %v558
    %v560 = vadd.f32 %v559, 0.0036580483
    %v561 = vmul.f32 %v556, %v560
    %v562 = vadd.f32 %v561, 0.05243302
    %v563 = vmul.f32 %v556, %v562
    %v564 = vadd.f32 %v563, 0.18741608
    %v565 = vmul.f32 %v556, %v564
    %v566 = vadd.f32 %v565, 1.1283791
    %v567 = vmul.f32 %v514, %v566
    %v568 = vmul.f32 %v556, 3.8918573e-05
    %v569 = vadd.f32 %v568, 0.001143296
    %v570 = vmul.f32 %v556, %v569
    %v571 = vadd.f32 %v570, 0.014752088
    %v572 = vmul.f32 %v556, %v571
    %v573 = vadd.f32 %v572, 0.112945676
    %v574 = vmul.f32 %v556, %v573
    %v575 = vadd.f32 %v574, 0.4994258
    %v576 = vmul.f32 %v556, %v575
    %v577 = vadd.f32 %v576, 1.0
    %v578 = vrcp.pop %v577
    %v579 = vmul.f32 %v577, %v578
    %v580 = vsub.f32 1.0, %v579
    %v581 = vmul.f32 %v578, %v580
    %v582 = vadd.f32 %v578, %v581
    %vm583 = vweird.f32 %v577
    %vm584 = vweird.f32 %v578
    %vm585 = vmor %vm583, %vm584
    %v586 = vsel %vm585, %v578, %v582
    %v587 = vand.u32 2147483647, %v577
    %vm588 = vcmp.eq.f32.partialorder %v587, 8.507059e+37
    %v589 = vand.u32 %v577, 2147483648
    %v590 = vor.u32 1.1754944e-38, %v589
    %v591 = vsel %vm588, %v590, %v586
    %v592 = vmul.f32 %v567, %v591
    %v593 = vmin.f32 %v592, 1.0
    %v594 = vmax.f32 %v593, -1.0
    %v595 = vadd.f32 %v554, 1.0
    %v596 = vadd.f32 %v594, 1.0
    %v597 = vmul.f32 %v511, %v595
    %v598 = vmul.f32 %v512, %v596
    %v599 = vpack.c.bf16 %v598, %v597
    %v600 = vld [vmem:[#allocation2 + $0x48] sm:$0xf]
    %v601 = vld [vmem:[#allocation2 + $0x4c] sm:$0xf]
    %v602 = vld [vmem:[#allocation2 + $0x50] sm:$0xf]
    %v603 = vld [vmem:[#allocation2 + $0x54] sm:$0xf]
    %v604 = vld [vmem:[#allocation2 + $0x58] sm:$0xf]
    %v605 = vld [vmem:[#allocation2 + $0x5c] sm:$0xf]
    %v606 = vld [vmem:[#allocation2 + $0x60] sm:$0xf]
    %v607 = vld [vmem:[#allocation2 + $0x64] sm:$0xf]
    %v608 = vld [vmem:[#allocation2 + $0x68] sm:$0xf]
    %v609 = vld [vmem:[#allocation2 + $0x6c] sm:$0xf]
    %v610 = vld [vmem:[#allocation2 + $0x70] sm:$0xf]
    %v611 = vld [vmem:[#allocation2 + $0x74] sm:$0xf]
    %v612 = vld [vmem:[#allocation2 + $0x78] sm:$0xf]
    %v613 = vld [vmem:[#allocation2 + $0x7c] sm:$0xf]
    %v614 = vld [vmem:[#allocation2 + $0x80] sm:$0xf]
    %v615 = vld [vmem:[#allocation2 + $0x84] sm:$0xf]
    %v616 = vld [vmem:[#allocation4 + $0x7] sm:$0x1]
    %v617 = vperm.slane %v616, 0
    %v634 = vunpack.c.l.b16 %v600
    %v635 = vunpack.c.l.b16 %v601
    %v636 = vunpack.c.l.b16 %v602
    %v637 = vunpack.c.l.b16 %v603
    %v638 = vunpack.c.l.b16 %v604
    %v639 = vunpack.c.l.b16 %v605
    %v640 = vunpack.c.l.b16 %v606
    %v641 = vunpack.c.l.b16 %v607
    %v642 = vunpack.c.l.b16 %v608
    %v643 = vunpack.c.l.b16 %v609
    %v644 = vunpack.c.l.b16 %v610
    %v645 = vunpack.c.l.b16 %v611
    %v646 = vunpack.c.l.b16 %v612
    %v647 = vunpack.c.l.b16 %v613
    %v648 = vunpack.c.l.b16 %v614
    %v649 = vunpack.c.l.b16 %v615
    %v650 = vpack.c.b16 %v635, %v634
    %v651 = vpack.c.b16 %v637, %v636
    %v652 = vpack.c.b16 %v639, %v638
    %v653 = vpack.c.b16 %v641, %v640
    %v654 = vpack.c.b16 %v643, %v642
    %v655 = vpack.c.b16 %v645, %v644
    %v656 = vpack.c.b16 %v647, %v646
    %v657 = vpack.c.b16 %v649, %v648
    %666 = vmatpush.bf16.msra.mxu0 %v657
    %667 = vmatpush.bf16.msra.mxu0 %v656
    %668 = vmatpush.bf16.msra.mxu0 %v655
    %669 = vmatpush.bf16.msra.mxu0 %v654
    %670 = vmatpush.bf16.msra.mxu0 %v653
    %671 = vmatpush.bf16.msra.mxu0 %v652
    %672 = vmatpush.bf16.msra.mxu0 %v651
    %673 = vmatpush.bf16.msra.mxu0 %v650
    %674 = vmatmul.bf16.gmra.mxu0 %v599
    %v675 = vpop.f32.mrf.mxu0
    %v676 = vadd.f32 %v617, %v675
    %v677 = vpop.f32.mrf.mxu0
    %v678 = vadd.f32 %v617, %v677
    %679 = vdwg.mxu0
    %v680 = vadd.f32 %v417, %v676
    %v681 = vadd.f32 %v418, %v678
    %v682 = vld [vmem:[#allocation4 + $0x8] sm:$0x1]
    %v683 = vld [vmem:[#allocation4 + $0x9] sm:$0x1]
    %v684 = vsel %vm145, %v680, 0.0
    %685 = vadd.xlane.f32.xlu0 %v684
    %v686 = vpop.xlane.xlu0 %685
    %v687 = vsel %vm145, %v681, 0.0
    %688 = vadd.xlane.f32.xlu0 %v687
    %v689 = vpop.xlane.xlu0 %688
    %v690 = vmul.f32 %v680, %v680
    %v691 = vmul.f32 %v681, %v681
    %v692 = vsel %vm145, %v690, 0.0
    %693 = vadd.xlane.f32.xlu0 %v692
    %v694 = vpop.xlane.xlu0 %693
    %v695 = vsel %vm145, %v691, 0.0
    %696 = vadd.xlane.f32.xlu0 %v695
    %v697 = vpop.xlane.xlu0 %696
    %v698 = vmul.f32 %v686, 0.03125
    %v699 = vmul.f32 %v689, 0.03125
    %v700 = vmul.f32 %v694, 0.03125
    %v701 = vmul.f32 %v697, 0.03125
    %v702 = vmul.f32 %v698, %v698
    %v703 = vmul.f32 %v699, %v699
    %v704 = vsub.f32 %v700, %v702
    %v705 = vsub.f32 %v701, %v703
    %v706 = vsub.f32 %v680, %v698
    %v707 = vsub.f32 %v681, %v699
    %v708 = vadd.f32 %v704, 1e-05
    %v709 = vadd.f32 %v705, 1e-05
    %v710 = vrsqrt.pop %v708
    %v711 = vmul.f32 %v710, %v708
    %v712 = vmul.f32 %v711, %v710
    %v713 = vmul.f32 0.5, %v712
    %v714 = vsub.f32 1.5, %v713
    %v715 = vmul.f32 %v710, %v714
    %vm716 = vweird.f32 %v708
    %vm717 = vweird.f32 %v710
    %vm718 = vmor %vm716, %vm717
    %v719 = vsel %vm718, %v710, %v715
    %v720 = vrsqrt.pop %v709
    %v721 = vmul.f32 %v720, %v709
    %v722 = vmul.f32 %v721, %v720
    %v723 = vmul.f32 0.5, %v722
    %v724 = vsub.f32 1.5, %v723
    %v725 = vmul.f32 %v720, %v724
    %vm726 = vweird.f32 %v709
    %vm727 = vweird.f32 %v720
    %vm728 = vmor %vm726, %vm727
    %v729 = vsel %vm728, %v720, %v725
    %v730 = vmul.f32 %v706, %v719
    %v731 = vmul.f32 %v707, %v729
    %v732 = vperm.slane %v682, 0
    %v733 = vmul.f32 %v730, %v732
    %v734 = vmul.f32 %v731, %v732
    %v735 = vperm.slane %v683, 0
    %v736 = vadd.f32 %v733, %v735
    %v737 = vadd.f32 %v734, %v735
    %v738 = vpack.c.bf16 %v737, %v736
    %v739 = vld [vmem:[#allocation2 + $0x88] sm:$0xf]
    %v740 = vld [vmem:[#allocation2 + $0x8c] sm:$0xf]
    %v741 = vld [vmem:[#allocation2 + $0x90] sm:$0xf]
    %v742 = vld [vmem:[#allocation2 + $0x94] sm:$0xf]
    %v743 = vld [vmem:[#allocation4 + $0xc] sm:$0x1]
    %v744 = vperm.slane %v743, 0
    %v749 = vunpack.c.l.b16 %v739
    %v750 = vunpack.c.l.b16 %v740
    %v751 = vunpack.c.l.b16 %v741
    %v752 = vunpack.c.l.b16 %v742
    %v753 = vpack.c.b16 %v750, %v749
    %v754 = vpack.c.b16 %v752, %v751
    %v758 = vsel %vm145, %v738, 0
    %760 = vmatpush.bf16.msra.mxu0 0
    %761 = vmatpush.bf16.msra.mxu0 0
    %762 = vmatpush.bf16.msra.mxu0 0
    %763 = vmatpush.bf16.msra.mxu0 0
    %764 = vmatpush.bf16.msra.mxu0 0
    %765 = vmatpush.bf16.msra.mxu0 0
    %766 = vmatpush.bf16.msra.mxu0 %v754
    %767 = vmatpush.bf16.msra.mxu0 %v753
    %768 = vmatmul.bf16.gmra.mxu0 %v758
    %v769 = vpop.f32.mrf.mxu0
    %v770 = vadd.f32 %v744, %v769
    %v771 = vpop.f32.mrf.mxu0
    %v772 = vadd.f32 %v744, %v771
    %773 = vdwg.mxu0
    %776 = vrot.lane.b32.xlu0 %v770, 112
    %v777 = vpop.permute.xlu0 %776
    %778 = vrot.lane.b32.xlu0 %v772, 112
    %v779 = vpop.permute.xlu0 %778
    %782 = vrot.lane.b32.xlu0 %v770, 64
    %v783 = vpop.permute.xlu0 %782
    %784 = vrot.lane.b32.xlu0 %v772, 64
    %v785 = vpop.permute.xlu0 %784
    %v788 = vsel %vm244, %v783, 0.0
    %v789 = vsel %vm244, %v785, 0.0
    %v790 = vsel %vm253, %v783, 0.0
    %v791 = vsel %vm253, %v785, 0.0
    %v792 = vpack.c.bf16 %v772, %v770
    %v793 = vpack.c.bf16 %v779, %v777
    %796 = vrot.lane.b32.xlu0 %v792, 96
    %v797 = vpop.permute.xlu0 %796
    %798 = vrot.lane.b32.xlu0 %v793, 96
    %v799 = vpop.permute.xlu0 %798
    %v801 = vsel %vm264, %v792, 0
    %v804 = vsel %vm264, %v793, 0
    %v807 = vsel %vm264, %v797, 0
    %v810 = vsel %vm264, %v799, 0
    %812 = vmatpush.bf16.xpose.msra.mxu0 0
    %813 = vmatpush.bf16.xpose.msra.mxu0 0
    %814 = vmatpush.bf16.xpose.msra.mxu0 0
    %815 = vmatpush.bf16.xpose.msra.mxu0 0
    %816 = vmatpush.bf16.xpose.msra.mxu0 0
    %817 = vmatpush.bf16.xpose.msra.mxu0 0
    %818 = vmatpush.bf16.xpose.msra.mxu0 %v810
    %819 = vmatpush.bf16.xpose.msra.mxu0 %v807
    %820 = vmatmul.bf16.gmra.mxu0 %v801
    %v821 = vpop.f32.mrf.mxu0
    %v822 = vadd.f32 0.0, %v821
    %v823 = vpop.f32.mrf.mxu0
    %v824 = vadd.f32 0.0, %v823
    %825 = vmatmul.bf16.gmra.mxu0 %v804
    %v826 = vpop.f32.mrf.mxu0
    %v827 = vadd.f32 0.0, %v826
    %v828 = vpop.f32.mrf.mxu0
    %v829 = vadd.f32 0.0, %v828
    %830 = vdwg.mxu0
    %v831 = vmul.f32 %v822, 0.25
    %v832 = vmul.f32 %v824, 0.25
    %v833 = vmul.f32 %v827, 0.25
    %v834 = vmul.f32 %v829, 0.25
    %v835 = vadd.f32 %v831, %v139
    %v836 = vadd.f32 %v832, %v140
    %v837 = vadd.f32 %v833, %v141
    %v838 = vadd.f32 %v834, %v142
    %v839 = vsel %vm145, %v835, -inf
    %840 = vmax.xlane.f32.xlu0 %v839
    %v841 = vpop.xlane.xlu0 %840
    %v842 = vsel %vm145, %v836, -inf
    %843 = vmax.xlane.f32.xlu0 %v842
    %v844 = vpop.xlane.xlu0 %843
    %v845 = vsel %vm145, %v837, -inf
    %846 = vmax.xlane.f32.xlu0 %v845
    %v847 = vpop.xlane.xlu0 %846
    %v848 = vsel %vm145, %v838, -inf
    %849 = vmax.xlane.f32.xlu0 %v848
    %v850 = vpop.xlane.xlu0 %849
    %v851 = vsub.f32 %v835, %v841
    %v852 = vsub.f32 %v836, %v844
    %v853 = vsub.f32 %v837, %v847
    %v854 = vsub.f32 %v838, %v850
    %v855 = vmul.f32 %v851, 1.442695
    %v856 = vpow.pop %v855
    %v857 = vmul.f32 %v852, 1.442695
    %v858 = vpow.pop %v857
    %v859 = vmul.f32 %v853, 1.442695
    %v860 = vpow.pop %v859
    %v861 = vmul.f32 %v854, 1.442695
    %v862 = vpow.pop %v861
    %v863 = vsel %vm145, %v856, 0.0
    %864 = vadd.xlane.f32.xlu0 %v863
    %v865 = vpop.xlane.xlu0 %864
    %v866 = vsel %vm145, %v858, 0.0
    %867 = vadd.xlane.f32.xlu0 %v866
    %v868 = vpop.xlane.xlu0 %867
    %v869 = vsel %vm145, %v860, 0.0
    %870 = vadd.xlane.f32.xlu0 %v869
    %v871 = vpop.xlane.xlu0 %870
    %v872 = vsel %vm145, %v862, 0.0
    %873 = vadd.xlane.f32.xlu0 %v872
    %v874 = vpop.xlane.xlu0 %873
    %v875 = vrcp.pop %v865
    %v876 = vrcp.pop %v868
    %v877 = vrcp.pop %v871
    %v878 = vrcp.pop %v874
    %v879 = vmul.f32 %v856, %v875
    %v880 = vmul.f32 %v858, %v876
    %v881 = vmul.f32 %v860, %v877
    %v882 = vmul.f32 %v862, %v878
    %v883 = vpack.c.bf16 %v880, %v879
    %v884 = vpack.c.bf16 %v882, %v881
    %v885 = vpack.c.bf16 %v789, %v788
    %v886 = vpack.c.bf16 %v791, %v790
    %v888 = vsel %vm145, %v883, 0
    %v891 = vsel %vm145, %v884, 0
    %893 = vmatpush.bf16.msra.mxu0 0
    %894 = vmatpush.bf16.msra.mxu0 0
    %895 = vmatpush.bf16.msra.mxu0 0
    %896 = vmatpush.bf16.msra.mxu0 0
    %897 = vmatpush.bf16.msra.mxu0 0
    %898 = vmatpush.bf16.msra.mxu0 0
    %899 = vmatpush.bf16.msra.mxu0 %v886
    %900 = vmatpush.bf16.msra.mxu0 %v885
    %901 = vmatmul.bf16.gmra.mxu0 %v888
    %v902 = vpop.f32.mrf.mxu0
    %v903 = vadd.f32 0.0, %v902
    %v904 = vpop.f32.mrf.mxu0
    %v905 = vadd.f32 0.0, %v904
    %906 = vmatmul.bf16.gmra.mxu0 %v891
    %v907 = vpop.f32.mrf.mxu0
    %v908 = vadd.f32 0.0, %v907
    %v909 = vpop.f32.mrf.mxu0
    %v910 = vadd.f32 0.0, %v909
    %911 = vdwg.mxu0
    %v912 = vadd.f32 %v903, %v908
    %v913 = vadd.f32 %v905, %v910
    %v914 = vpack.c.bf16 %v913, %v912
    %v915 = vld [vmem:[#allocation2 + $0x98] sm:$0xf]
    %v916 = vld [vmem:[#allocation2 + $0x9c] sm:$0xf]
    %v917 = vld [vmem:[#allocation2 + $0xa0] sm:$0xf]
    %v918 = vld [vmem:[#allocation2 + $0xa4] sm:$0xf]
    %v923 = vunpack.c.l.b16 %v915
    %v924 = vunpack.c.l.b16 %v916
    %v925 = vunpack.c.l.b16 %v917
    %v926 = vunpack.c.l.b16 %v918
    %v927 = vpack.c.b16 %v924, %v923
    %v928 = vpack.c.b16 %v926, %v925
    %v932 = vsel %vm145, %v914, 0
    %934 = vmatpush.bf16.msra.mxu0 0
    %935 = vmatpush.bf16.msra.mxu0 0
    %936 = vmatpush.bf16.msra.mxu0 0
    %937 = vmatpush.bf16.msra.mxu0 0
    %938 = vmatpush.bf16.msra.mxu0 0
    %939 = vmatpush.bf16.msra.mxu0 0
    %940 = vmatpush.bf16.msra.mxu0 %v928
    %941 = vmatpush.bf16.msra.mxu0 %v927
    %942 = vmatmul.bf16.gmra.mxu0 %v932
    %v943 = vpop.f32.mrf.mxu0
    %v944 = vadd.f32 0.0, %v943
    %v945 = vpop.f32.mrf.mxu0
    %v946 = vadd.f32 0.0, %v945
    %947 = vdwg.mxu0
    %v948 = vadd.f32 %v680, %v944
    %v949 = vadd.f32 %v681, %v946
    %v950 = vld [vmem:[#allocation4 + $0xd] sm:$0x1]
    %v951 = vperm.slane %v950, 0
    %v952 = vadd.f32 %v948, %v951
    %v953 = vadd.f32 %v949, %v951
    %v954 = vld [vmem:[#allocation4 + $0xa] sm:$0x1]
    %v955 = vld [vmem:[#allocation4 + $0xb] sm:$0x1]
    %v956 = vsel %vm145, %v952, 0.0
    %957 = vadd.xlane.f32.xlu0 %v956
    %v958 = vpop.xlane.xlu0 %957
    %v959 = vsel %vm145, %v953, 0.0
    %960 = vadd.xlane.f32.xlu0 %v959
    %v961 = vpop.xlane.xlu0 %960
    %v962 = vmul.f32 %v952, %v952
    %v963 = vmul.f32 %v953, %v953
    %v964 = vsel %vm145, %v962, 0.0
    %965 = vadd.xlane.f32.xlu0 %v964
    %v966 = vpop.xlane.xlu0 %965
    %v967 = vsel %vm145, %v963, 0.0
    %968 = vadd.xlane.f32.xlu0 %v967
    %v969 = vpop.xlane.xlu0 %968
    %v970 = vmul.f32 %v958, 0.03125
    %v971 = vmul.f32 %v961, 0.03125
    %v972 = vmul.f32 %v966, 0.03125
    %v973 = vmul.f32 %v969, 0.03125
    %v974 = vmul.f32 %v970, %v970
    %v975 = vmul.f32 %v971, %v971
    %v976 = vsub.f32 %v972, %v974
    %v977 = vsub.f32 %v973, %v975
    %v978 = vsub.f32 %v952, %v970
    %v979 = vsub.f32 %v953, %v971
    %v980 = vadd.f32 %v976, 1e-05
    %v981 = vadd.f32 %v977, 1e-05
    %v982 = vrsqrt.pop %v980
    %v983 = vmul.f32 %v982, %v980
    %v984 = vmul.f32 %v983, %v982
    %v985 = vmul.f32 0.5, %v984
    %v986 = vsub.f32 1.5, %v985
    %v987 = vmul.f32 %v982, %v986
    %vm988 = vweird.f32 %v980
    %vm989 = vweird.f32 %v982
    %vm990 = vmor %vm988, %vm989
    %v991 = vsel %vm990, %v982, %v987
    %v992 = vrsqrt.pop %v981
    %v993 = vmul.f32 %v992, %v981
    %v994 = vmul.f32 %v993, %v992
    %v995 = vmul.f32 0.5, %v994
    %v996 = vsub.f32 1.5, %v995
    %v997 = vmul.f32 %v992, %v996
    %vm998 = vweird.f32 %v981
    %vm999 = vweird.f32 %v992
    %vm1000 = vmor %vm998, %vm999
    %v1001 = vsel %vm1000, %v992, %v997
    %v1002 = vmul.f32 %v978, %v991
    %v1003 = vmul.f32 %v979, %v1001
    %v1004 = vperm.slane %v954, 0
    %v1005 = vmul.f32 %v1002, %v1004
    %v1006 = vmul.f32 %v1003, %v1004
    %v1007 = vperm.slane %v955, 0
    %v1008 = vadd.f32 %v1005, %v1007
    %v1009 = vadd.f32 %v1006, %v1007
    %v1010 = vpack.c.bf16 %v1009, %v1008
    %v1011 = vld [vmem:[#allocation2 + $0xa8] sm:$0xf]
    %v1012 = vld [vmem:[#allocation2 + $0xac] sm:$0xf]
    %v1013 = vld [vmem:[#allocation2 + $0xb0] sm:$0xf]
    %v1014 = vld [vmem:[#allocation2 + $0xb4] sm:$0xf]
    %v1015 = vld [vmem:[#allocation4 + $0xe] sm:$0x1]
    %v1016 = vperm.slane %v1015, 0
    %v1021 = vunpack.c.l.b16 %v1011
    %v1022 = vunpack.c.l.b16 %v1012
    %v1023 = vunpack.c.l.b16 %v1013
    %v1024 = vunpack.c.l.b16 %v1014
    %v1025 = vpack.c.b16 %v1022, %v1021
    %v1026 = vpack.c.b16 %v1024, %v1023
    %v1030 = vsel %vm145, %v1010, 0
    %1032 = vmatpush.bf16.msra.mxu0 0
    %1033 = vmatpush.bf16.msra.mxu0 0
    %1034 = vmatpush.bf16.msra.mxu0 0
    %1035 = vmatpush.bf16.msra.mxu0 0
    %1036 = vmatpush.bf16.msra.mxu0 0
    %1037 = vmatpush.bf16.msra.mxu0 0
    %1038 = vmatpush.bf16.msra.mxu0 %v1026
    %1039 = vmatpush.bf16.msra.mxu0 %v1025
    %1040 = vmatmul.bf16.gmra.mxu0 %v1030
    %v1041 = vpop.f32.mrf.mxu0
    %v1042 = vadd.f32 %v1016, %v1041
    %v1043 = vpop.f32.mrf.mxu0
    %v1044 = vadd.f32 %v1016, %v1043
    %1045 = vdwg.mxu0
    %v1046 = vmul.f32 %v1042, 0.5
    %v1047 = vmul.f32 %v1044, 0.5
    %v1048 = vmul.f32 %v1042, 0.70710677
    %v1049 = vmul.f32 %v1044, 0.70710677
    %v1050 = vmul.f32 %v1048, %v1048
    %v1051 = vmin.f32 16.0, %v1050
    %v1052 = vmul.f32 %v1051, 2.1237322e-06
    %v1053 = vadd.f32 %v1052, 0.00028619796
    %v1054 = vmul.f32 %v1051, %v1053
    %v1055 = vadd.f32 %v1054, 0.0036580483
    %v1056 = vmul.f32 %v1051, %v1055
    %v1057 = vadd.f32 %v1056, 0.05243302
    %v1058 = vmul.f32 %v1051, %v1057
    %v1059 = vadd.f32 %v1058, 0.18741608
    %v1060 = vmul.f32 %v1051, %v1059
    %v1061 = vadd.f32 %v1060, 1.1283791
    %v1062 = vmul.f32 %v1048, %v1061
    %v1063 = vmul.f32 %v1051, 3.8918573e-05
    %v1064 = vadd.f32 %v1063, 0.001143296
    %v1065 = vmul.f32 %v1051, %v1064
    %v1066 = vadd.f32 %v1065, 0.014752088
    %v1067 = vmul.f32 %v1051, %v1066
    %v1068 = vadd.f32 %v1067, 0.112945676
    %v1069 = vmul.f32 %v1051, %v1068
    %v1070 = vadd.f32 %v1069, 0.4994258
    %v1071 = vmul.f32 %v1051, %v1070
    %v1072 = vadd.f32 %v1071, 1.0
    %v1073 = vrcp.pop %v1072
    %v1074 = vmul.f32 %v1072, %v1073
    %v1075 = vsub.f32 1.0, %v1074
    %v1076 = vmul.f32 %v1073, %v1075
    %v1077 = vadd.f32 %v1073, %v1076
    %vm1078 = vweird.f32 %v1072
    %vm1079 = vweird.f32 %v1073
    %vm1080 = vmor %vm1078, %vm1079
    %v1081 = vsel %vm1080, %v1073, %v1077
    %v1082 = vand.u32 2147483647, %v1072
    %vm1083 = vcmp.eq.f32.partialorder %v1082, 8.507059e+37
    %v1084 = vand.u32 %v1072, 2147483648
    %v1085 = vor.u32 1.1754944e-38, %v1084
    %v1086 = vsel %vm1083, %v1085, %v1081
    %v1087 = vmul.f32 %v1062, %v1086
    %v1088 = vmin.f32 %v1087, 1.0
    %v1089 = vmax.f32 %v1088, -1.0
    %v1090 = vmul.f32 %v1049, %v1049
    %v1091 = vmin.f32 16.0, %v1090
    %v1092 = vmul.f32 %v1091, 2.1237322e-06
    %v1093 = vadd.f32 %v1092, 0.00028619796
    %v1094 = vmul.f32 %v1091, %v1093
    %v1095 = vadd.f32 %v1094, 0.0036580483
    %v1096 = vmul.f32 %v1091, %v1095
    %v1097 = vadd.f32 %v1096, 0.05243302
    %v1098 = vmul.f32 %v1091, %v1097
    %v1099 = vadd.f32 %v1098, 0.18741608
    %v1100 = vmul.f32 %v1091, %v1099
    %v1101 = vadd.f32 %v1100, 1.1283791
    %v1102 = vmul.f32 %v1049, %v1101
    %v1103 = vmul.f32 %v1091, 3.8918573e-05
    %v1104 = vadd.f32 %v1103, 0.001143296
    %v1105 = vmul.f32 %v1091, %v1104
    %v1106 = vadd.f32 %v1105, 0.014752088
    %v1107 = vmul.f32 %v1091, %v1106
    %v1108 = vadd.f32 %v1107, 0.112945676
    %v1109 = vmul.f32 %v1091, %v1108
    %v1110 = vadd.f32 %v1109, 0.4994258
    %v1111 = vmul.f32 %v1091, %v1110
    %v1112 = vadd.f32 %v1111, 1.0
    %v1113 = vrcp.pop %v1112
    %v1114 = vmul.f32 %v1112, %v1113
    %v1115 = vsub.f32 1.0, %v1114
    %v1116 = vmul.f32 %v1113, %v1115
    %v1117 = vadd.f32 %v1113, %v1116
    %vm1118 = vweird.f32 %v1112
    %vm1119 = vweird.f32 %v1113
    %vm1120 = vmor %vm1118, %vm1119
    %v1121 = vsel %vm1120, %v1113, %v1117
    %v1122 = vand.u32 2147483647, %v1112
    %vm1123 = vcmp.eq.f32.partialorder %v1122, 8.507059e+37
    %v1124 = vand.u32 %v1112, 2147483648
    %v1125 = vor.u32 1.1754944e-38, %v1124
    %v1126 = vsel %vm1123, %v1125, %v1121
    %v1127 = vmul.f32 %v1102, %v1126
    %v1128 = vmin.f32 %v1127, 1.0
    %v1129 = vmax.f32 %v1128, -1.0
    %v1130 = vadd.f32 %v1089, 1.0
    %v1131 = vadd.f32 %v1129, 1.0
    %v1132 = vmul.f32 %v1046, %v1130
    %v1133 = vmul.f32 %v1047, %v1131
    %v1134 = vpack.c.bf16 %v1133, %v1132
    %v1135 = vld [vmem:[#allocation2 + $0xb8] sm:$0xf]
    %v1136 = vld [vmem:[#allocation2 + $0xbc] sm:$0xf]
    %v1137 = vld [vmem:[#allocation2 + $0xc0] sm:$0xf]
    %v1138 = vld [vmem:[#allocation2 + $0xc4] sm:$0xf]
    %v1139 = vld [vmem:[#allocation2 + $0xc8] sm:$0xf]
    %v1140 = vld [vmem:[#allocation2 + $0xcc] sm:$0xf]
    %v1141 = vld [vmem:[#allocation2 + $0xd0] sm:$0xf]
    %v1142 = vld [vmem:[#allocation2 + $0xd4] sm:$0xf]
    %v1143 = vld [vmem:[#allocation2 + $0xd8] sm:$0xf]
    %v1144 = vld [vmem:[#allocation2 + $0xdc] sm:$0xf]
    %v1145 = vld [vmem:[#allocation2 + $0xe0] sm:$0xf]
    %v1146 = vld [vmem:[#allocation2 + $0xe4] sm:$0xf]
    %v1147 = vld [vmem:[#allocation2 + $0xe8] sm:$0xf]
    %v1148 = vld [vmem:[#allocation2 + $0xec] sm:$0xf]
    %v1149 = vld [vmem:[#allocation2 + $0xf0] sm:$0xf]
    %v1150 = vld [vmem:[#allocation2 + $0xf4] sm:$0xf]
    %v1151 = vld [vmem:[#allocation4 + $0xf] sm:$0x1]
    %v1152 = vperm.slane %v1151, 0
    %v1169 = vunpack.c.l.b16 %v1135
    %v1170 = vunpack.c.l.b16 %v1136
    %v1171 = vunpack.c.l.b16 %v1137
    %v1172 = vunpack.c.l.b16 %v1138
    %v1173 = vunpack.c.l.b16 %v1139
    %v1174 = vunpack.c.l.b16 %v1140
    %v1175 = vunpack.c.l.b16 %v1141
    %v1176 = vunpack.c.l.b16 %v1142
    %v1177 = vunpack.c.l.b16 %v1143
    %v1178 = vunpack.c.l.b16 %v1144
    %v1179 = vunpack.c.l.b16 %v1145
    %v1180 = vunpack.c.l.b16 %v1146
    %v1181 = vunpack.c.l.b16 %v1147
    %v1182 = vunpack.c.l.b16 %v1148
    %v1183 = vunpack.c.l.b16 %v1149
    %v1184 = vunpack.c.l.b16 %v1150
    %v1185 = vpack.c.b16 %v1170, %v1169
    %v1186 = vpack.c.b16 %v1172, %v1171
    %v1187 = vpack.c.b16 %v1174, %v1173
    %v1188 = vpack.c.b16 %v1176, %v1175
    %v1189 = vpack.c.b16 %v1178, %v1177
    %v1190 = vpack.c.b16 %v1180, %v1179
    %v1191 = vpack.c.b16 %v1182, %v1181
    %v1192 = vpack.c.b16 %v1184, %v1183
    %1201 = vmatpush.bf16.msra.mxu0 %v1192
    %1202 = vmatpush.bf16.msra.mxu0 %v1191
    %1203 = vmatpush.bf16.msra.mxu0 %v1190
    %1204 = vmatpush.bf16.msra.mxu0 %v1189
    %1205 = vmatpush.bf16.msra.mxu0 %v1188
    %1206 = vmatpush.bf16.msra.mxu0 %v1187
    %1207 = vmatpush.bf16.msra.mxu0 %v1186
    %1208 = vmatpush.bf16.msra.mxu0 %v1185
    %1209 = vmatmul.bf16.gmra.mxu0 %v1134
    %v1210 = vpop.f32.mrf.mxu0
    %v1211 = vadd.f32 %v1152, %v1210
    %v1212 = vpop.f32.mrf.mxu0
    %v1213 = vadd.f32 %v1152, %v1212
    %1214 = vdwg.mxu0
    %v1215 = vadd.f32 %v952, %v1211
    %v1216 = vadd.f32 %v953, %v1213
    %v1217 = vld [vmem:[#allocation4 + $0x10] sm:$0x1]
    %v1218 = vld [vmem:[#allocation4 + $0x11] sm:$0x1]
    %v1219 = vsel %vm145, %v1215, 0.0
    %1220 = vadd.xlane.f32.xlu0 %v1219
    %v1221 = vpop.xlane.xlu0 %1220
    %v1222 = vsel %vm145, %v1216, 0.0
    %1223 = vadd.xlane.f32.xlu0 %v1222
    %v1224 = vpop.xlane.xlu0 %1223
    %v1225 = vmul.f32 %v1215, %v1215
    %v1226 = vmul.f32 %v1216, %v1216
    %v1227 = vsel %vm145, %v1225, 0.0
    %1228 = vadd.xlane.f32.xlu0 %v1227
    %v1229 = vpop.xlane.xlu0 %1228
    %v1230 = vsel %vm145, %v1226, 0.0
    %1231 = vadd.xlane.f32.xlu0 %v1230
    %v1232 = vpop.xlane.xlu0 %1231
    %v1233 = vmul.f32 %v1221, 0.03125
    %v1234 = vmul.f32 %v1224, 0.03125
    %v1235 = vmul.f32 %v1229, 0.03125
    %v1236 = vmul.f32 %v1232, 0.03125
    %v1237 = vmul.f32 %v1233, %v1233
    %v1238 = vmul.f32 %v1234, %v1234
    %v1239 = vsub.f32 %v1235, %v1237
    %v1240 = vsub.f32 %v1236, %v1238
    %v1241 = vsub.f32 %v1215, %v1233
    %v1242 = vsub.f32 %v1216, %v1234
    %v1243 = vadd.f32 %v1239, 1e-05
    %v1244 = vadd.f32 %v1240, 1e-05
    %v1245 = vrsqrt.pop %v1243
    %v1246 = vmul.f32 %v1245, %v1243
    %v1247 = vmul.f32 %v1246, %v1245
    %v1248 = vmul.f32 0.5, %v1247
    %v1249 = vsub.f32 1.5, %v1248
    %v1250 = vmul.f32 %v1245, %v1249
    %vm1251 = vweird.f32 %v1243
    %vm1252 = vweird.f32 %v1245
    %vm1253 = vmor %vm1251, %vm1252
    %v1254 = vsel %vm1253, %v1245, %v1250
    %v1255 = vrsqrt.pop %v1244
    %v1256 = vmul.f32 %v1255, %v1244
    %v1257 = vmul.f32 %v1256, %v1255
    %v1258 = vmul.f32 0.5, %v1257
    %v1259 = vsub.f32 1.5, %v1258
    %v1260 = vmul.f32 %v1255, %v1259
    %vm1261 = vweird.f32 %v1244
    %vm1262 = vweird.f32 %v1255
    %vm1263 = vmor %vm1261, %vm1262
    %v1264 = vsel %vm1263, %v1255, %v1260
    %v1265 = vmul.f32 %v1241, %v1254
    %v1266 = vmul.f32 %v1242, %v1264
    %v1267 = vperm.slane %v1217, 0
    %v1268 = vmul.f32 %v1265, %v1267
    %v1269 = vmul.f32 %v1266, %v1267
    %v1270 = vperm.slane %v1218, 0
    %v1271 = vadd.f32 %v1268, %v1270
    %v1272 = vadd.f32 %v1269, %v1270
    %v1273 = vpack.c.bf16 %v1272, %v1271
    %v1274 = vld [vmem:[#allocation2 + $0xf8] sm:$0xf]
    %v1275 = vld [vmem:[#allocation2 + $0xfc] sm:$0xf]
    %v1276 = vld [vmem:[#allocation2 + $0x100] sm:$0xf]
    %v1277 = vld [vmem:[#allocation2 + $0x104] sm:$0xf]
    %v1278 = vld [vmem:[#allocation4 + $0x12] sm:$0x1]
    %v1279 = vperm.slane %v1278, 0
    %v1284 = vunpack.c.l.b16 %v1274
    %v1285 = vunpack.c.l.b16 %v1275
    %v1286 = vunpack.c.l.b16 %v1276
    %v1287 = vunpack.c.l.b16 %v1277
    %v1288 = vpack.c.b16 %v1285, %v1284
    %v1289 = vpack.c.b16 %v1287, %v1286
    %v1293 = vsel %vm145, %v1273, 0
    %1295 = vmatpush.bf16.msra.mxu0 0
    %1296 = vmatpush.bf16.msra.mxu0 0
    %1297 = vmatpush.bf16.msra.mxu0 0
    %1298 = vmatpush.bf16.msra.mxu0 0
    %1299 = vmatpush.bf16.msra.mxu0 0
    %1300 = vmatpush.bf16.msra.mxu0 0
    %1301 = vmatpush.bf16.msra.mxu0 %v1289
    %1302 = vmatpush.bf16.msra.mxu0 %v1288
    %1303 = vmatmul.bf16.gmra.mxu0 %v1293
    %v1304 = vpop.f32.mrf.mxu0
    %v1305 = vadd.f32 %v1279, %v1304
    %v1306 = vpop.f32.mrf.mxu0
    %v1307 = vadd.f32 %v1279, %v1306
    %1308 = vdwg.mxu0
    %vm1309 = vcmp.lt.s32.totalorder %v50, 96
    %v1310 = vmax.f32 %v1305, 0.0
    %v1311 = vmax.f32 %v1307, 0.0
    %v1312 = vsel %vm1309, %v1310, %v1305
    %v1313 = vsel %vm1309, %v1311, %v1307
    %v1314 = vpack.c.bf16 %v1313, %v1312
    %v1315 = vld [vmem:[#allocation2 + $0x108] sm:$0xf]
    %v1316 = vld [vmem:[#allocation2 + $0x10c] sm:$0xf]
    %v1317 = vld [vmem:[#allocation2 + $0x110] sm:$0xf]
    %v1318 = vld [vmem:[#allocation2 + $0x114] sm:$0xf]
    %v1319 = vld [vmem:[#allocation2 + $0x118] sm:$0xf]
    %v1320 = vld [vmem:[#allocation2 + $0x11c] sm:$0xf]
    %v1321 = vld [vmem:[#allocation2 + $0x120] sm:$0xf]
    %v1322 = vld [vmem:[#allocation2 + $0x124] sm:$0xf]
    %v1323 = vld [vmem:[#allocation2 + $0x128] sm:$0xf]
    %v1324 = vld [vmem:[#allocation2 + $0x12c] sm:$0xf]
    %v1325 = vld [vmem:[#allocation2 + $0x130] sm:$0xf]
    %v1326 = vld [vmem:[#allocation2 + $0x134] sm:$0xf]
    %v1327 = vld [vmem:[#allocation2 + $0x138] sm:$0xf]
    %v1328 = vld [vmem:[#allocation2 + $0x13c] sm:$0xf]
    %v1329 = vld [vmem:[#allocation2 + $0x140] sm:$0xf]
    %v1330 = vld [vmem:[#allocation2 + $0x144] sm:$0xf]
    %v1331 = vld [vmem:[#allocation4 + $0x13] sm:$0x1]
    %v1332 = vperm.slane %v1331, 0
    %v1349 = vunpack.c.l.b16 %v1315
    %v1350 = vunpack.c.l.b16 %v1316
    %v1351 = vunpack.c.l.b16 %v1317
    %v1352 = vunpack.c.l.b16 %v1318
    %v1353 = vunpack.c.l.b16 %v1319
    %v1354 = vunpack.c.l.b16 %v1320
    %v1355 = vunpack.c.l.b16 %v1321
    %v1356 = vunpack.c.l.b16 %v1322
    %v1357 = vunpack.c.l.b16 %v1323
    %v1358 = vunpack.c.l.b16 %v1324
    %v1359 = vunpack.c.l.b16 %v1325
    %v1360 = vunpack.c.l.b16 %v1326
    %v1361 = vunpack.c.l.b16 %v1327
    %v1362 = vunpack.c.l.b16 %v1328
    %v1363 = vunpack.c.l.b16 %v1329
    %v1364 = vunpack.c.l.b16 %v1330
    %v1365 = vpack.c.b16 %v1350, %v1349
    %v1366 = vpack.c.b16 %v1352, %v1351
    %v1367 = vpack.c.b16 %v1354, %v1353
    %v1368 = vpack.c.b16 %v1356, %v1355
    %v1369 = vpack.c.b16 %v1358, %v1357
    %v1370 = vpack.c.b16 %v1360, %v1359
    %v1371 = vpack.c.b16 %v1362, %v1361
    %v1372 = vpack.c.b16 %v1364, %v1363
    %1381 = vmatpush.bf16.msra.mxu0 %v1372
    %1382 = vmatpush.bf16.msra.mxu0 %v1371
    %1383 = vmatpush.bf16.msra.mxu0 %v1370
    %1384 = vmatpush.bf16.msra.mxu0 %v1369
    %1385 = vmatpush.bf16.msra.mxu0 %v1368
    %1386 = vmatpush.bf16.msra.mxu0 %v1367
    %1387 = vmatpush.bf16.msra.mxu0 %v1366
    %1388 = vmatpush.bf16.msra.mxu0 %v1365
    %1389 = vmatmul.bf16.gmra.mxu0 %v1314
    %v1390 = vpop.f32.mrf.mxu0
    %v1391 = vadd.f32 %v1332, %v1390
    %v1392 = vpop.f32.mrf.mxu0
    %v1393 = vadd.f32 %v1332, %v1392
    %1394 = vdwg.mxu0
    %1395 = vst [vmem:[%s3] sm:$0xff] %v1391
    %1396 = vst [vmem:[%s3 + $0x8] sm:$0xff] %v1393
    // Predicated region
    $region22: #{world_model_forward.1} parent=1 // pred_check
      _
    $region23: #{world_model_forward.1} parent=1 // pred_check_branch
      %1398 = sbr.rel (0) target = $region25
    $region24: #{world_model_forward.1} parent=1 // pred_region
      _
    $region25: #{world_model_forward.1} parent=1 // pred_fallthru
      _
    // Predicated region
    $region26: #{world_model_forward.1} parent=1 // pred_check
      _
    $region27: #{world_model_forward.1} parent=1 // pred_check_branch
      %1400 = sbr.rel (0) target = $region29
    $region28: #{world_model_forward.1} parent=1 // pred_region
      _
    $region29: #{world_model_forward.1} parent=1 // pred_fallthru
      _
    %1401 = vsyncpa [#allocation3], 1
    %1402 = vsyncpa [#allocation5], 1

</llo_original>
